<compile_context>
chip_gen: v7x
topology: tpu7x:2x2x1
jax: 0.10.0
libtpu: 0.0.40
codegen_flags: <defaults>
</compile_context>

<pallas_src>
import functools

import jax
import jax.numpy as jnp
from jax.experimental import pallas as pl
from jax.experimental.pallas import tpu as pltpu


def _fused_head_kernel(x_ref, w1_ref, b1_ref, w2_ref, b2_ref, w3_ref, b3_ref,
                       out_ref):
    # x_ref: (TB, HW, C) bfloat16, channels lane-dense.
    # AdaptiveAvgPool2d(1) + view(B, -1)  ==  mean over the spatial axis.
    inv_hw = 1.0 / x_ref.shape[1]
    pooled = jnp.sum(x_ref[...].astype(jnp.float32), axis=1) * inv_hw   # (TB, C)

    # Fused gender|age heads: bf16 operands, f32 accumulation on the MXU.
    h = jnp.dot(pooled.astype(jnp.bfloat16), w1_ref[...],
                preferred_element_type=jnp.float32) + b1_ref[...]       # (TB, 512)
    h = jnp.maximum(h, 0.0)                                             # ReLU
    h = jnp.dot(h.astype(jnp.bfloat16), w2_ref[...],
                preferred_element_type=jnp.float32) + b2_ref[...]       # (TB, 256)
    h = jnp.maximum(h, 0.0)                                             # ReLU
    out = jnp.dot(h.astype(jnp.bfloat16), w3_ref[...],
                  preferred_element_type=jnp.float32) + b3_ref[...]     # (TB, 2)

    # column 0 = gender logit -> Sigmoid, column 1 = age (no activation)
    col = jax.lax.broadcasted_iota(jnp.int32, out.shape, dimension=1)
    out_ref[...] = jnp.where(col == 0, jax.nn.sigmoid(out), out)


def pack_params(p):
    """Fuse the two 3-layer heads into block-structured weights.

    Layer 1: concatenated columns (no wasted FLOPs).
    Layers 2/3: block-diagonal so the gender/age hidden states never mix.
    Weights are cast to bf16; biases stay f32 (added to the f32 accumulator).
    """
    w1 = jnp.concatenate([p["wg1"], p["wa1"]], axis=1)            # (C, 512)
    b1 = jnp.concatenate([p["bg1"], p["ba1"]], axis=1)            # (1, 512)

    w2 = jnp.zeros((512, 256), jnp.float32)
    w2 = w2.at[0:256, 0:128].set(p["wg2"]).at[256:512, 128:256].set(p["wa2"])
    b2 = jnp.concatenate([p["bg2"], p["ba2"]], axis=1)            # (1, 256)

    w3 = jnp.zeros((256, 2), jnp.float32)
    w3 = w3.at[0:128, 0:1].set(p["wg3"]).at[128:256, 1:2].set(p["wa3"])
    b3 = jnp.concatenate([p["bg3"], p["ba3"]], axis=1)            # (1, 2)

    return dict(w1=w1.astype(jnp.bfloat16), b1=b1,
                w2=w2.astype(jnp.bfloat16), b2=b2,
                w3=w3.astype(jnp.bfloat16), b3=b3)


@functools.partial(jax.jit, static_argnames=("tb",))
def age_gender_forward(x_nchw, fused, *, tb=128):
    """x_nchw: (B, C, H, W) float32 backbone feature map.

    Returns (gender (B, 1) after sigmoid, age (B, 1)).
    """
    B, C, H, W = x_nchw.shape
    HW = H * W
    # NCHW -> (B, HW, C), cast to bf16 (fused by XLA with the transpose):
    # pooled activations come out lane-dense in C and the kernel's dominant
    # input DMA is halved.
    # TODO(synk): ideally the backbone emits NHWC bf16 directly so this
    # transpose disappears from the host graph entirely.
    x = jnp.transpose(x_nchw, (0, 2, 3, 1)).reshape(B, HW, C).astype(jnp.bfloat16)

    tb = min(tb, B)                       # batch tile (keep B % tb == 0)
    grid = (pl.cdiv(B, tb),)

    w1, b1 = fused["w1"], fused["b1"]
    w2, b2 = fused["w2"], fused["b2"]
    w3, b3 = fused["w3"], fused["b3"]

    def resident(arr):
        # Same block index every grid step -> DMA'd once, stays in VMEM.
        nd = arr.ndim
        return pl.BlockSpec(arr.shape, lambda i, _nd=nd: (0,) * _nd)

    flops = 2 * B * (C * 512 + 512 * 256 + 256 * 2) + B * HW * C
    bytes_accessed = (x.size * 2
                      + (w1.size + w2.size + w3.size) * 2
                      + (b1.size + b2.size + b3.size) * 4
                      + B * 2 * 4)

    out = pl.pallas_call(
        _fused_head_kernel,
        out_shape=jax.ShapeDtypeStruct((B, 2), jnp.float32),
        grid=grid,
        in_specs=[
            pl.BlockSpec((tb, HW, C), lambda i: (i, 0, 0)),   # pipelined activations
            resident(w1), resident(b1),
            resident(w2), resident(b2),
            resident(w3), resident(b3),
        ],
        out_specs=pl.BlockSpec((tb, 2), lambda i: (i, 0)),
        compiler_params=pltpu.CompilerParams(
            dimension_semantics=("parallel",)),
        cost_estimate=pl.CostEstimate(
            flops=flops, transcendentals=B, bytes_accessed=bytes_accessed),
    )(x, w1, b1, w2, b2, w3, b3)

    gender = out[:, 0:1]
    age = out[:, 1:2]
    return gender, age


def make_params(key, in_features=512):
    """Deterministic synthetic parameter init (stand-in for weights_inint_seq)."""
    ks = jax.random.split(key, 12)

    def lin(kw, kb, fan_in, fan_out):
        scale = 1.0 / jnp.sqrt(jnp.float32(fan_in))
        w = jax.random.uniform(kw, (fan_in, fan_out), jnp.float32, -scale, scale)
        b = jax.random.uniform(kb, (1, fan_out), jnp.float32, -scale, scale)
        return w, b

    wg1, bg1 = lin(ks[0], ks[1], in_features, 256)
    wg2, bg2 = lin(ks[2], ks[3], 256, 128)
    wg3, bg3 = lin(ks[4], ks[5], 128, 1)
    wa1, ba1 = lin(ks[6], ks[7], in_features, 256)
    wa2, ba2 = lin(ks[8], ks[9], 256, 128)
    wa3, ba3 = lin(ks[10], ks[11], 128, 1)
    return dict(wg1=wg1, bg1=bg1, wg2=wg2, bg2=bg2, wg3=wg3, bg3=bg3,
                wa1=wa1, ba1=ba1, wa2=wa2, ba2=ba2, wa3=wa3, ba3=ba3)


def reference_forward(x_nchw, p):
    """Pure-JAX f32 reference for correctness check (matches the PyTorch module)."""
    B = x_nchw.shape[0]
    pooled = jnp.mean(x_nchw, axis=(2, 3))                 # (B, C)

    def head(h, w1, b1, w2, b2, w3, b3):
        h = jnp.maximum(h @ w1 + b1, 0.0)
        h = jnp.maximum(h @ w2 + b2, 0.0)
        return h @ w3 + b3

    g = jax.nn.sigmoid(head(pooled, p["wg1"], p["bg1"], p["wg2"], p["bg2"],
                            p["wg3"], p["bg3"]))
    a = head(pooled, p["wa1"], p["ba1"], p["wa2"], p["ba2"], p["wa3"], p["ba3"])
    return g.reshape(B, 1), a.reshape(B, 1)


if __name__ == "__main__":
    key = jax.random.PRNGKey(0)
    k_x, k_p = jax.random.split(key)

    # in_features = 512 * expansion (expansion = 1, resnet18/34-style backbone)
    B, C, H, W = 16, 512, 4, 4
    x = jax.random.normal(k_x, (B, C, H, W), jnp.float32)
    params = make_params(k_p, in_features=C)
    fused = pack_params(params)

    # tb=8 so the demo actually exercises grid=(2,) batch pipelining.
    gender, age = age_gender_forward(x, fused, tb=8)
    gender = jax.block_until_ready(gender)
    age = jax.block_until_ready(age)

    g_ref, a_ref = reference_forward(x, params)
    assert gender.shape == (B, 1) and age.shape == (B, 1)
    # bf16 weights/activations with f32 accumulation -> loosened tolerance.
    assert jnp.allclose(gender, g_ref, atol=2e-2, rtol=2e-2)
    assert jnp.allclose(age, a_ref, atol=2e-2, rtol=2e-2)

    print("KERNEL_OK")
</pallas_src>

<mosaic_0001>
module attributes {stable_mosaic.version = 11 : i64} {
  func.func @_fused_head_kernel(%arg0: i32, %arg1: memref<8x16x512xbf16, #tpu.memory_space<vmem>>, %arg2: memref<512x512xbf16, #tpu.memory_space<vmem>>, %arg3: memref<1x512xf32, #tpu.memory_space<vmem>>, %arg4: memref<512x256xbf16, #tpu.memory_space<vmem>>, %arg5: memref<1x256xf32, #tpu.memory_space<vmem>>, %arg6: memref<256x2xbf16, #tpu.memory_space<vmem>>, %arg7: memref<1x2xf32, #tpu.memory_space<vmem>>, %arg8: memref<8x2xf32, #tpu.memory_space<vmem>>) attributes {dimension_semantics = [#tpu.dimension_semantics<parallel>], iteration_bounds = array<i64: 2>, scalar_prefetch = 0 : i64, scratch_operands = 0 : i64, tpu.core_type = #tpu.core_type<tc>, window_params = [{transform_indices = @transform_0, window_bounds = array<i64: 8, 16, 512>}, {pipeline_mode = #tpu.pipeline_mode<synchronous>, transform_indices = @transform_1, window_bounds = array<i64: 512, 512>}, {pipeline_mode = #tpu.pipeline_mode<synchronous>, transform_indices = @transform_2, window_bounds = array<i64: 1, 512>}, {pipeline_mode = #tpu.pipeline_mode<synchronous>, transform_indices = @transform_3, window_bounds = array<i64: 512, 256>}, {pipeline_mode = #tpu.pipeline_mode<synchronous>, transform_indices = @transform_4, window_bounds = array<i64: 1, 256>}, {pipeline_mode = #tpu.pipeline_mode<synchronous>, transform_indices = @transform_5, window_bounds = array<i64: 256, 2>}, {pipeline_mode = #tpu.pipeline_mode<synchronous>, transform_indices = @transform_6, window_bounds = array<i64: 1, 2>}, {transform_indices = @transform_7, window_bounds = array<i64: 8, 2>}]} {
    %c0 = arith.constant 0 : index
    %c0_0 = arith.constant 0 : index
    %c0_1 = arith.constant 0 : index
    %0 = vector.load %arg1[%c0, %c0_0, %c0_1] : memref<8x16x512xbf16, #tpu.memory_space<vmem>>, vector<8x16x512xbf16>
    %1 = arith.extf %0 : vector<8x16x512xbf16> to vector<8x16x512xf32>
    %cst = arith.constant dense<0.000000e+00> : vector<8x512xf32>
    %2 = vector.multi_reduction <add>, %1, %cst [1] : vector<8x16x512xf32> to vector<8x512xf32>
    %cst_2 = arith.constant 6.250000e-02 : f32
    %3 = vector.broadcast %cst_2 : f32 to vector<8x512xf32>
    %4 = arith.mulf %2, %3 : vector<8x512xf32>
    %5 = arith.truncf %4 : vector<8x512xf32> to vector<8x512xbf16>
    %c0_3 = arith.constant 0 : index
    %c0_4 = arith.constant 0 : index
    %6 = vector.load %arg2[%c0_3, %c0_4] : memref<512x512xbf16, #tpu.memory_space<vmem>>, vector<512x512xbf16>
    %cst_5 = arith.constant dense<0.000000e+00> : vector<8x512xf32>
    %7 = tpu.matmul %5, %6, %cst_5 {dimension_numbers = #tpu.dot_dimension_numbers<[1], [0], [0], [1], [0, 0, 1, 1], [], []>} : vector<8x512xbf16>, vector<512x512xbf16>, vector<8x512xf32> -> vector<8x512xf32>
    %c0_6 = arith.constant 0 : index
    %c0_7 = arith.constant 0 : index
    %8 = vector.load %arg3[%c0_6, %c0_7] : memref<1x512xf32, #tpu.memory_space<vmem>>, vector<1x512xf32>
    %9 = vector.broadcast %8 : vector<1x512xf32> to vector<8x512xf32>
    %10 = arith.addf %7, %9 : vector<8x512xf32>
    %cst_8 = arith.constant 0.000000e+00 : f32
    %11 = vector.broadcast %cst_8 : f32 to vector<8x512xf32>
    %12 = arith.maximumf %10, %11 : vector<8x512xf32>
    %13 = arith.truncf %12 : vector<8x512xf32> to vector<8x512xbf16>
    %c0_9 = arith.constant 0 : index
    %c0_10 = arith.constant 0 : index
    %14 = vector.load %arg4[%c0_9, %c0_10] : memref<512x256xbf16, #tpu.memory_space<vmem>>, vector<512x256xbf16>
    %cst_11 = arith.constant dense<0.000000e+00> : vector<8x256xf32>
    %15 = tpu.matmul %13, %14, %cst_11 {dimension_numbers = #tpu.dot_dimension_numbers<[1], [0], [0], [1], [0, 0, 1, 1], [], []>} : vector<8x512xbf16>, vector<512x256xbf16>, vector<8x256xf32> -> vector<8x256xf32>
    %c0_12 = arith.constant 0 : index
    %c0_13 = arith.constant 0 : index
    %16 = vector.load %arg5[%c0_12, %c0_13] : memref<1x256xf32, #tpu.memory_space<vmem>>, vector<1x256xf32>
    %17 = vector.broadcast %16 : vector<1x256xf32> to vector<8x256xf32>
    %18 = arith.addf %15, %17 : vector<8x256xf32>
    %cst_14 = arith.constant 0.000000e+00 : f32
    %19 = vector.broadcast %cst_14 : f32 to vector<8x256xf32>
    %20 = arith.maximumf %18, %19 : vector<8x256xf32>
    %21 = arith.truncf %20 : vector<8x256xf32> to vector<8x256xbf16>
    %c0_15 = arith.constant 0 : index
    %c0_16 = arith.constant 0 : index
    %22 = vector.load %arg6[%c0_15, %c0_16] : memref<256x2xbf16, #tpu.memory_space<vmem>>, vector<256x2xbf16>
    %cst_17 = arith.constant dense<0.000000e+00> : vector<8x2xf32>
    %23 = tpu.matmul %21, %22, %cst_17 {dimension_numbers = #tpu.dot_dimension_numbers<[1], [0], [0], [1], [0, 0, 1, 1], [], []>} : vector<8x256xbf16>, vector<256x2xbf16>, vector<8x2xf32> -> vector<8x2xf32>
    %c0_18 = arith.constant 0 : index
    %c0_19 = arith.constant 0 : index
    %24 = vector.load %arg7[%c0_18, %c0_19] : memref<1x2xf32, #tpu.memory_space<vmem>>, vector<1x2xf32>
    %25 = vector.broadcast %24 : vector<1x2xf32> to vector<8x2xf32>
    %26 = arith.addf %23, %25 : vector<8x2xf32>
    %27 = tpu.iota {dimensions = array<i32: 1>} : vector<8x2xi32>
    %c0_i32 = arith.constant 0 : i32
    %28 = vector.broadcast %c0_i32 : i32 to vector<8x2xi32>
    %29 = arith.cmpi eq, %27, %28 : vector<8x2xi32>
    %30 = arith.negf %26 : vector<8x2xf32>
    %31 = math.exp %30 : vector<8x2xf32>
    %cst_20 = arith.constant 1.000000e+00 : f32
    %32 = vector.broadcast %cst_20 : f32 to vector<8x2xf32>
    %33 = arith.addf %32, %31 : vector<8x2xf32>
    %34 = arith.divf %32, %33 : vector<8x2xf32>
    %35 = arith.select %29, %34, %26 : vector<8x2xi1>, vector<8x2xf32>
    %c0_21 = arith.constant 0 : index
    %c0_22 = arith.constant 0 : index
    %36 = vector.load %arg8[%c0_21, %c0_22] : memref<8x2xf32, #tpu.memory_space<vmem>>, vector<8x2xf32>
    tpu.vector_store %arg8[%c0_21, %c0_22], %35 {strides = array<i32>} : memref<8x2xf32, #tpu.memory_space<vmem>>, vector<8x2xf32>,
    return
  }
  func.func @transform_0(%arg0: i32) -> (i32, i32, i32) {
    %c0_i32 = arith.constant 0 : i32
    %c0_i32_0 = arith.constant 0 : i32
    %c0_i32_1 = arith.constant 0 : i32
    return %arg0, %c0_i32, %c0_i32_0 : i32, i32, i32
  }
  func.func @transform_1(%arg0: i32) -> (i32, i32) {
    %c0_i32 = arith.constant 0 : i32
    %c0_i32_0 = arith.constant 0 : i32
    %c0_i32_1 = arith.constant 0 : i32
    return %c0_i32, %c0_i32_0 : i32, i32
  }
  func.func @transform_2(%arg0: i32) -> (i32, i32) {
    %c0_i32 = arith.constant 0 : i32
    %c0_i32_0 = arith.constant 0 : i32
    %c0_i32_1 = arith.constant 0 : i32
    return %c0_i32, %c0_i32_0 : i32, i32
  }
  func.func @transform_3(%arg0: i32) -> (i32, i32) {
    %c0_i32 = arith.constant 0 : i32
    %c0_i32_0 = arith.constant 0 : i32
    %c0_i32_1 = arith.constant 0 : i32
    return %c0_i32, %c0_i32_0 : i32, i32
  }
  func.func @transform_4(%arg0: i32) -> (i32, i32) {
    %c0_i32 = arith.constant 0 : i32
    %c0_i32_0 = arith.constant 0 : i32
    %c0_i32_1 = arith.constant 0 : i32
    return %c0_i32, %c0_i32_0 : i32, i32
  }
  func.func @transform_5(%arg0: i32) -> (i32, i32) {
    %c0_i32 = arith.constant 0 : i32
    %c0_i32_0 = arith.constant 0 : i32
    %c0_i32_1 = arith.constant 0 : i32
    return %c0_i32, %c0_i32_0 : i32, i32
  }
  func.func @transform_6(%arg0: i32) -> (i32, i32) {
    %c0_i32 = arith.constant 0 : i32
    %c0_i32_0 = arith.constant 0 : i32
    %c0_i32_1 = arith.constant 0 : i32
    return %c0_i32, %c0_i32_0 : i32, i32
  }
  func.func @transform_7(%arg0: i32) -> (i32, i32) {
    %c0_i32 = arith.constant 0 : i32
    %c0_i32_0 = arith.constant 0 : i32
    return %arg0, %c0_i32 : i32, i32
  }
}

</mosaic_0001>

<llo_original>
// kernel: age_gender_forward.1
$region0: #{age_gender_forward.1}
  #allocation0 [shape = 'u32[]', space=smem, size = 0x4, offset = 0x4, fixed_abs, tag = 'smem constant byte address 0x4 - core index']
  #allocation1 [shape = 'u32[144,128]{1,0:T(1,128)}', space=vmem, size = 0x12000, scoped, tag = 'internal scratch']
  %s0 = inlined_call_operand.vmem [shape: bf16[16,16,512], index: 0, kind: input, shape index: {}]
  %s1 = inlined_call_operand.vmem [shape: bf16[512,512], index: 1, kind: input, shape index: {}]
  %s2 = inlined_call_operand.vmem [shape: f32[1,512], index: 2, kind: input, shape index: {}]
  %s3 = inlined_call_operand.vmem [shape: bf16[512,256], index: 3, kind: input, shape index: {}]
  %s4 = inlined_call_operand.vmem [shape: f32[1,256], index: 4, kind: input, shape index: {}]
  %s5 = inlined_call_operand.vmem [shape: bf16[256,2], index: 5, kind: input, shape index: {}]
  %s6 = inlined_call_operand.vmem [shape: f32[1,2], index: 6, kind: input, shape index: {}]
  %s7 = inlined_call_operand.vmem [shape: f32[16,2], index: 7, kind: output, shape index: {}]
  %s8 = sld [smem:[#allocation0]]
  $region61: #{age_gender_forward.1} parent=0
    _
  %s10 = ssub.s32 1, %s8
  %s11 = scalar_select 0, %s10, %s8
  loop: start=0, step=1, limit=4
  $region2: #{age_gender_forward.1} parent=0 // loop_pre_header
    _
  $region3: #{age_gender_forward.1} parent=0 // loop_header
    %s13 = sphi 0, %s17
    %p14 = scmp.ge.s32.totalorder %s13, 4
    %s23 = sphi 0, %s25
    %s26 = sphi 0, %s23
    %s27 = sphi 0, %s26
    %s43 = sphi 0, %s27
    %s47 = sphi 0, %s47
    %s49 = sphi 0, %s47
    %s50 = sphi 0, %s49
    %s64 = sphi 0, %s50
    %s68 = sphi 0, %s68
    %s70 = sphi 0, %s68
    %s71 = sphi 0, %s70
    %s85 = sphi 0, %s71
    %s89 = sphi 0, %s89
    %s91 = sphi 0, %s89
    %s92 = sphi 0, %s91
    %s106 = sphi 0, %s92
    %s110 = sphi 0, %s110
    %s112 = sphi 0, %s110
    %s113 = sphi 0, %s112
    %s127 = sphi 0, %s113
    %s131 = sphi 0, %s131
    %s133 = sphi 0, %s131
    %s134 = sphi 0, %s133
    %s148 = sphi 0, %s134
    %s152 = sphi 0, %s152
    %s154 = sphi 0, %s152
    %s155 = sphi 0, %s154
    %s169 = sphi 0, %s155
    %s175 = sphi 0, %s177
    %s178 = sphi 0, %s175
    %s179 = sphi 0, %s178
    %s195 = sphi 0, %s179
  $region4: #{age_gender_forward.1} parent=0 // loop_header_branch
    %16 = sbr.rel (%p14) target = $region8
  $region5: #{age_gender_forward.1} parent=0 // loop_body
    %s18 = ssub.s32 %s13, 1
    %s19 = ssub.s32 %s13, 2
    %s20 = sadd.s32 %s13, 1
    %s21 = ssub.s32 %s13, %s20
    %p22 = scmp.eq.s32.totalorder %s21, 0
    %s24 = sadd.s32 %s23, 1
    %s25 = scalar_select %p22, %s23, %s24
    %p28 = pneg %p22
    %p29 = scmp.eq.s32.totalorder %s13, 1
    %p30 = por %p28, %p29
    %p31 = scmp.ne.s32.totalorder %s23, %s26
    %p32 = scmp.eq.s32.totalorder %s13, 0
    %p33 = por %p31, %p32
    %p34 = scmp.ne.s32.totalorder %s23, %s26
    %p35 = scmp.eq.s32.totalorder %s18, 1
    %p36 = por %p34, %p35
    %p37 = scmp.ne.s32.totalorder %s26, %s27
    %p38 = scmp.eq.s32.totalorder %s18, 0
    %p39 = por %p37, %p38
    %p40 = scmp.ne.s32.totalorder %s26, %s27
    %p41 = scmp.eq.s32.totalorder %s19, 1
    %p42 = por %p40, %p41
    %p44 = scmp.ne.s32.totalorder %s27, %s43
    %p45 = scmp.eq.s32.totalorder %s19, 0
    %p46 = por %p44, %p45
    %s48 = sadd.s32 %s47, 1
    %p51 = scmp.eq.s32.totalorder %s13, 1
    %p52 = scmp.ne.s32.totalorder %s47, %s49
    %p53 = scmp.eq.s32.totalorder %s13, 0
    %p54 = por %p52, %p53
    %p55 = scmp.ne.s32.totalorder %s47, %s49
    %p56 = scmp.eq.s32.totalorder %s18, 1
    %p57 = por %p55, %p56
    %p58 = scmp.ne.s32.totalorder %s49, %s50
    %p59 = scmp.eq.s32.totalorder %s18, 0
    %p60 = por %p58, %p59
    %p61 = scmp.ne.s32.totalorder %s49, %s50
    %p62 = scmp.eq.s32.totalorder %s19, 1
    %p63 = por %p61, %p62
    %p65 = scmp.ne.s32.totalorder %s50, %s64
    %p66 = scmp.eq.s32.totalorder %s19, 0
    %p67 = por %p65, %p66
    %s69 = sadd.s32 %s68, 1
    %p72 = scmp.eq.s32.totalorder %s13, 1
    %p73 = scmp.ne.s32.totalorder %s68, %s70
    %p74 = scmp.eq.s32.totalorder %s13, 0
    %p75 = por %p73, %p74
    %p76 = scmp.ne.s32.totalorder %s68, %s70
    %p77 = scmp.eq.s32.totalorder %s18, 1
    %p78 = por %p76, %p77
    %p79 = scmp.ne.s32.totalorder %s70, %s71
    %p80 = scmp.eq.s32.totalorder %s18, 0
    %p81 = por %p79, %p80
    %p82 = scmp.ne.s32.totalorder %s70, %s71
    %p83 = scmp.eq.s32.totalorder %s19, 1
    %p84 = por %p82, %p83
    %p86 = scmp.ne.s32.totalorder %s71, %s85
    %p87 = scmp.eq.s32.totalorder %s19, 0
    %p88 = por %p86, %p87
    %s90 = sadd.s32 %s89, 1
    %p93 = scmp.eq.s32.totalorder %s13, 1
    %p94 = scmp.ne.s32.totalorder %s89, %s91
    %p95 = scmp.eq.s32.totalorder %s13, 0
    %p96 = por %p94, %p95
    %p97 = scmp.ne.s32.totalorder %s89, %s91
    %p98 = scmp.eq.s32.totalorder %s18, 1
    %p99 = por %p97, %p98
    %p100 = scmp.ne.s32.totalorder %s91, %s92
    %p101 = scmp.eq.s32.totalorder %s18, 0
    %p102 = por %p100, %p101
    %p103 = scmp.ne.s32.totalorder %s91, %s92
    %p104 = scmp.eq.s32.totalorder %s19, 1
    %p105 = por %p103, %p104
    %p107 = scmp.ne.s32.totalorder %s92, %s106
    %p108 = scmp.eq.s32.totalorder %s19, 0
    %p109 = por %p107, %p108
    %s111 = sadd.s32 %s110, 1
    %p114 = scmp.eq.s32.totalorder %s13, 1
    %p115 = scmp.ne.s32.totalorder %s110, %s112
    %p116 = scmp.eq.s32.totalorder %s13, 0
    %p117 = por %p115, %p116
    %p118 = scmp.ne.s32.totalorder %s110, %s112
    %p119 = scmp.eq.s32.totalorder %s18, 1
    %p120 = por %p118, %p119
    %p121 = scmp.ne.s32.totalorder %s112, %s113
    %p122 = scmp.eq.s32.totalorder %s18, 0
    %p123 = por %p121, %p122
    %p124 = scmp.ne.s32.totalorder %s112, %s113
    %p125 = scmp.eq.s32.totalorder %s19, 1
    %p126 = por %p124, %p125
    %p128 = scmp.ne.s32.totalorder %s113, %s127
    %p129 = scmp.eq.s32.totalorder %s19, 0
    %p130 = por %p128, %p129
    %s132 = sadd.s32 %s131, 1
    %p135 = scmp.eq.s32.totalorder %s13, 1
    %p136 = scmp.ne.s32.totalorder %s131, %s133
    %p137 = scmp.eq.s32.totalorder %s13, 0
    %p138 = por %p136, %p137
    %p139 = scmp.ne.s32.totalorder %s131, %s133
    %p140 = scmp.eq.s32.totalorder %s18, 1
    %p141 = por %p139, %p140
    %p142 = scmp.ne.s32.totalorder %s133, %s134
    %p143 = scmp.eq.s32.totalorder %s18, 0
    %p144 = por %p142, %p143
    %p145 = scmp.ne.s32.totalorder %s133, %s134
    %p146 = scmp.eq.s32.totalorder %s19, 1
    %p147 = por %p145, %p146
    %p149 = scmp.ne.s32.totalorder %s134, %s148
    %p150 = scmp.eq.s32.totalorder %s19, 0
    %p151 = por %p149, %p150
    %s153 = sadd.s32 %s152, 1
    %p156 = scmp.eq.s32.totalorder %s13, 1
    %p157 = scmp.ne.s32.totalorder %s152, %s154
    %p158 = scmp.eq.s32.totalorder %s13, 0
    %p159 = por %p157, %p158
    %p160 = scmp.ne.s32.totalorder %s152, %s154
    %p161 = scmp.eq.s32.totalorder %s18, 1
    %p162 = por %p160, %p161
    %p163 = scmp.ne.s32.totalorder %s154, %s155
    %p164 = scmp.eq.s32.totalorder %s18, 0
    %p165 = por %p163, %p164
    %p166 = scmp.ne.s32.totalorder %s154, %s155
    %p167 = scmp.eq.s32.totalorder %s19, 1
    %p168 = por %p166, %p167
    %p170 = scmp.ne.s32.totalorder %s155, %s169
    %p171 = scmp.eq.s32.totalorder %s19, 0
    %p172 = por %p170, %p171
    %s173 = ssub.s32 %s13, %s20
    %p174 = scmp.eq.s32.totalorder %s173, 0
    %s176 = sadd.s32 %s175, 1
    %s177 = scalar_select %p174, %s175, %s176
    %p180 = pneg %p174
    %p181 = scmp.eq.s32.totalorder %s13, 1
    %p182 = por %p180, %p181
    %p183 = scmp.ne.s32.totalorder %s175, %s178
    %p184 = scmp.eq.s32.totalorder %s13, 0
    %p185 = por %p183, %p184
    %p186 = scmp.ne.s32.totalorder %s175, %s178
    %p187 = scmp.eq.s32.totalorder %s18, 1
    %p188 = por %p186, %p187
    %p189 = scmp.ne.s32.totalorder %s178, %s179
    %p190 = scmp.eq.s32.totalorder %s18, 0
    %p191 = por %p189, %p190
    %p192 = scmp.ne.s32.totalorder %s178, %s179
    %p193 = scmp.eq.s32.totalorder %s19, 1
    %p194 = por %p192, %p193
    %p196 = scmp.ne.s32.totalorder %s179, %s195
    %p197 = scmp.eq.s32.totalorder %s19, 0
    %p198 = por %p196, %p197
    %p199 = scmp.le.s32.totalorder 1, %s13
    %p200 = scmp.lt.s32.totalorder %s13, 3
    %p201 = pnand %p199, %p200
    %p202 = pneg %p201
    // Predicated region
    $region9: #{age_gender_forward.1} parent=5 // pred_check
      _
    $region10: #{age_gender_forward.1} parent=5 // pred_check_branch
      %204 = sbr.rel (%p201) target = $region12
    $region11: #{age_gender_forward.1} parent=5 // pred_region
      %s205 = ssub.s32 %s13, 1
      // Predicated region
      $region13: #{age_gender_forward.1} parent=11 // pred_check
        %p206 = pneg %p60
      $region14: #{age_gender_forward.1} parent=11 // pred_check_branch
        %208 = sbr.rel (%p206) target = $region16
      $region15: #{age_gender_forward.1} parent=11 // pred_region
        _
      $region16: #{age_gender_forward.1} parent=11 // pred_fallthru
        _
      // Predicated region
      $region17: #{age_gender_forward.1} parent=11 // pred_check
        %p209 = pneg %p81
      $region18: #{age_gender_forward.1} parent=11 // pred_check_branch
        %211 = sbr.rel (%p209) target = $region20
      $region19: #{age_gender_forward.1} parent=11 // pred_region
        _
      $region20: #{age_gender_forward.1} parent=11 // pred_fallthru
        _
      // Predicated region
      $region21: #{age_gender_forward.1} parent=11 // pred_check
        %p212 = pneg %p102
      $region22: #{age_gender_forward.1} parent=11 // pred_check_branch
        %214 = sbr.rel (%p212) target = $region24
      $region23: #{age_gender_forward.1} parent=11 // pred_region
        _
      $region24: #{age_gender_forward.1} parent=11 // pred_fallthru
        _
      // Predicated region
      $region25: #{age_gender_forward.1} parent=11 // pred_check
        %p215 = pneg %p123
      $region26: #{age_gender_forward.1} parent=11 // pred_check_branch
        %217 = sbr.rel (%p215) target = $region28
      $region27: #{age_gender_forward.1} parent=11 // pred_region
        _
      $region28: #{age_gender_forward.1} parent=11 // pred_fallthru
        _
      // Predicated region
      $region29: #{age_gender_forward.1} parent=11 // pred_check
        %p218 = pneg %p144
      $region30: #{age_gender_forward.1} parent=11 // pred_check_branch
        %220 = sbr.rel (%p218) target = $region32
      $region31: #{age_gender_forward.1} parent=11 // pred_region
        _
      $region32: #{age_gender_forward.1} parent=11 // pred_fallthru
        _
      // Predicated region
      $region33: #{age_gender_forward.1} parent=11 // pred_check
        %p221 = pneg %p165
      $region34: #{age_gender_forward.1} parent=11 // pred_check_branch
        %223 = sbr.rel (%p221) target = $region36
      $region35: #{age_gender_forward.1} parent=11 // pred_region
        _
      $region36: #{age_gender_forward.1} parent=11 // pred_fallthru
        _
    $region12: #{age_gender_forward.1} parent=5 // pred_fallthru
      _
    %p224 = scmp.lt.s32.totalorder %s13, 2
    // Predicated region
    $region37: #{age_gender_forward.1} parent=5 // pred_check
      %p225 = pneg %p224
    $region38: #{age_gender_forward.1} parent=5 // pred_check_branch
      %227 = sbr.rel (%p225) target = $region40
    $region39: #{age_gender_forward.1} parent=5 // pred_region
      // Predicated region
      $region41: #{age_gender_forward.1} parent=39 // pred_check
        %p228 = pneg %p33
      $region42: #{age_gender_forward.1} parent=39 // pred_check_branch
        %230 = sbr.rel (%p228) target = $region44
      $region43: #{age_gender_forward.1} parent=39 // pred_region
        %s231 = smul.u32 8, %s13
        %p232 = scmp.lt.s32.totalorder %s231, 15
        %s233 = scalar_select %p232, %s231, 15
        %s234 = smul.addr %s233, 8
        %s235 = smul.addr %s234, 4
        %s236 = scalar_lea.vmem %s0, %s235
        %s237 = smul.u32 8, %s13
      $region44: #{age_gender_forward.1} parent=39 // pred_fallthru
        _
    $region40: #{age_gender_forward.1} parent=5 // pred_fallthru
      _
    %p238 = scmp.le.s32.totalorder 1, %s13
    %p239 = scmp.lt.s32.totalorder %s13, 3
    %p240 = pnand %p238, %p239
    %p241 = pneg %p240
    // Predicated region
    $region45: #{age_gender_forward.1} parent=5 // pred_check
      _
    $region46: #{age_gender_forward.1} parent=5 // pred_check_branch
      %243 = sbr.rel (%p240) target = $region48
    $region47: #{age_gender_forward.1} parent=5 // pred_region
      %s244 = ssub.s32 %s13, 1
      %s245 = smul.u32 8, %s18
      %p246 = scmp.lt.s32.totalorder %s245, 15
      %s247 = scalar_select %p246, %s245, 15
      %s248 = smul.addr %s247, 8
      %s249 = smul.addr %s248, 4
      %s250 = scalar_lea.vmem %s0, %s249
      %p251 = pneg %p39
      %p252 = pneg %p36
      %p253 = pneg %p60
      %p254 = pneg %p57
      %p255 = pneg %p81
      %p256 = pneg %p78
      %p257 = pneg %p102
      %p258 = pneg %p99
      %p259 = pneg %p123
      %p260 = pneg %p120
      %p261 = pneg %p144
      %p262 = pneg %p141
      %p263 = pneg %p165
      %p264 = pneg %p162
      %p265 = pneg %p191
      %p266 = pneg %p188
      %p267 = scmp.lt.s32.totalorder %s18, 1
      %s268 = scalar_select %p267, %s18, 1
      %s269 = smul.addr %s268, 8
      %s270 = scalar_lea.vmem %s7, %s269
      %s271 = smul.u32 8, %s18
      %p272 = scmp.lt.s32.totalorder %s271, 15
      %s273 = scalar_select %p272, %s271, 15
      %s274 = smul.addr %s273, 8
      %s275 = smul.addr %s274, 4
      %s276 = scalar_lea.vmem %s0, %s275
      %s277 = smul.u32 8, %s18
      %p278 = scmp.lt.s32.totalorder %s18, 1
      %s279 = scalar_select %p278, %s18, 1
      %s280 = smul.addr %s279, 8
      %s281 = scalar_lea.vmem %s7, %s280
      %v283 = vld [vmem:[%s276] sm:$0xff]
      %v284 = vld [vmem:[%s276 + $0x8] sm:$0xff]
      %v285 = vld [vmem:[%s276 + $0x10] sm:$0xff]
      %v286 = vld [vmem:[%s276 + $0x18] sm:$0xff]
      %v287 = vld [vmem:[%s276 + $0x20] sm:$0xff]
      %v288 = vld [vmem:[%s276 + $0x28] sm:$0xff]
      %v289 = vld [vmem:[%s276 + $0x30] sm:$0xff]
      %v290 = vld [vmem:[%s276 + $0x38] sm:$0xff]
      %v291 = vld [vmem:[%s276 + $0x40] sm:$0xff]
      %v292 = vld [vmem:[%s276 + $0x48] sm:$0xff]
      %v293 = vld [vmem:[%s276 + $0x50] sm:$0xff]
      %v294 = vld [vmem:[%s276 + $0x58] sm:$0xff]
      %v295 = vld [vmem:[%s276 + $0x60] sm:$0xff]
      %v296 = vld [vmem:[%s276 + $0x68] sm:$0xff]
      %v297 = vld [vmem:[%s276 + $0x70] sm:$0xff]
      %v298 = vld [vmem:[%s276 + $0x78] sm:$0xff]
      %v299 = vld [vmem:[%s276 + $0x80] sm:$0xff]
      %v300 = vld [vmem:[%s276 + $0x88] sm:$0xff]
      %v301 = vld [vmem:[%s276 + $0x90] sm:$0xff]
      %v302 = vld [vmem:[%s276 + $0x98] sm:$0xff]
      %v303 = vld [vmem:[%s276 + $0xa0] sm:$0xff]
      %v304 = vld [vmem:[%s276 + $0xa8] sm:$0xff]
      %v305 = vld [vmem:[%s276 + $0xb0] sm:$0xff]
      %v306 = vld [vmem:[%s276 + $0xb8] sm:$0xff]
      %v307 = vld [vmem:[%s276 + $0xc0] sm:$0xff]
      %v308 = vld [vmem:[%s276 + $0xc8] sm:$0xff]
      %v309 = vld [vmem:[%s276 + $0xd0] sm:$0xff]
      %v310 = vld [vmem:[%s276 + $0xd8] sm:$0xff]
      %v311 = vld [vmem:[%s276 + $0xe0] sm:$0xff]
      %v312 = vld [vmem:[%s276 + $0xe8] sm:$0xff]
      %v313 = vld [vmem:[%s276 + $0xf0] sm:$0xff]
      %v314 = vld [vmem:[%s276 + $0xf8] sm:$0xff]
      %v315 = vunpack.c.l.bf16 %v283
      %v316 = vunpack.c.h.bf16 %v283
      %v317 = vunpack.c.l.bf16 %v284
      %v318 = vunpack.c.h.bf16 %v284
      %v319 = vunpack.c.l.bf16 %v285
      %v320 = vunpack.c.h.bf16 %v285
      %v321 = vunpack.c.l.bf16 %v286
      %v322 = vunpack.c.h.bf16 %v286
      %v323 = vunpack.c.l.bf16 %v287
      %v324 = vunpack.c.h.bf16 %v287
      %v325 = vunpack.c.l.bf16 %v288
      %v326 = vunpack.c.h.bf16 %v288
      %v327 = vunpack.c.l.bf16 %v289
      %v328 = vunpack.c.h.bf16 %v289
      %v329 = vunpack.c.l.bf16 %v290
      %v330 = vunpack.c.h.bf16 %v290
      %v331 = vunpack.c.l.bf16 %v291
      %v332 = vunpack.c.h.bf16 %v291
      %v333 = vunpack.c.l.bf16 %v292
      %v334 = vunpack.c.h.bf16 %v292
      %v335 = vunpack.c.l.bf16 %v293
      %v336 = vunpack.c.h.bf16 %v293
      %v337 = vunpack.c.l.bf16 %v294
      %v338 = vunpack.c.h.bf16 %v294
      %v339 = vunpack.c.l.bf16 %v295
      %v340 = vunpack.c.h.bf16 %v295
      %v341 = vunpack.c.l.bf16 %v296
      %v342 = vunpack.c.h.bf16 %v296
      %v343 = vunpack.c.l.bf16 %v297
      %v344 = vunpack.c.h.bf16 %v297
      %v345 = vunpack.c.l.bf16 %v298
      %v346 = vunpack.c.h.bf16 %v298
      %v347 = vunpack.c.l.bf16 %v299
      %v348 = vunpack.c.h.bf16 %v299
      %v349 = vunpack.c.l.bf16 %v300
      %v350 = vunpack.c.h.bf16 %v300
      %v351 = vunpack.c.l.bf16 %v301
      %v352 = vunpack.c.h.bf16 %v301
      %v353 = vunpack.c.l.bf16 %v302
      %v354 = vunpack.c.h.bf16 %v302
      %v355 = vunpack.c.l.bf16 %v303
      %v356 = vunpack.c.h.bf16 %v303
      %v357 = vunpack.c.l.bf16 %v304
      %v358 = vunpack.c.h.bf16 %v304
      %v359 = vunpack.c.l.bf16 %v305
      %v360 = vunpack.c.h.bf16 %v305
      %v361 = vunpack.c.l.bf16 %v306
      %v362 = vunpack.c.h.bf16 %v306
      %v363 = vunpack.c.l.bf16 %v307
      %v364 = vunpack.c.h.bf16 %v307
      %v365 = vunpack.c.l.bf16 %v308
      %v366 = vunpack.c.h.bf16 %v308
      %v367 = vunpack.c.l.bf16 %v309
      %v368 = vunpack.c.h.bf16 %v309
      %v369 = vunpack.c.l.bf16 %v310
      %v370 = vunpack.c.h.bf16 %v310
      %v371 = vunpack.c.l.bf16 %v311
      %v372 = vunpack.c.h.bf16 %v311
      %v373 = vunpack.c.l.bf16 %v312
      %v374 = vunpack.c.h.bf16 %v312
      %v375 = vunpack.c.l.bf16 %v313
      %v376 = vunpack.c.h.bf16 %v313
      %v377 = vunpack.c.l.bf16 %v314
      %v378 = vunpack.c.h.bf16 %v314
      %v379 = vadd.f32 %v315, %v319
      %v380 = vrot.slane %v379, 4
      %v381 = vadd.f32 %v379, %v380
      %v382 = vrot.slane %v381, 2
      %v383 = vadd.f32 %v381, %v382
      %v384 = vrot.slane %v383, 1
      %v385 = vadd.f32 %v383, %v384
      %v386 = vadd.f32 %v316, %v320
      %v387 = vrot.slane %v386, 4
      %v388 = vadd.f32 %v386, %v387
      %v389 = vrot.slane %v388, 2
      %v390 = vadd.f32 %v388, %v389
      %v391 = vrot.slane %v390, 1
      %v392 = vadd.f32 %v390, %v391
      %v393 = vadd.f32 %v317, %v321
      %v394 = vrot.slane %v393, 4
      %v395 = vadd.f32 %v393, %v394
      %v396 = vrot.slane %v395, 2
      %v397 = vadd.f32 %v395, %v396
      %v398 = vrot.slane %v397, 1
      %v399 = vadd.f32 %v397, %v398
      %v400 = vadd.f32 %v318, %v322
      %v401 = vrot.slane %v400, 4
      %v402 = vadd.f32 %v400, %v401
      %v403 = vrot.slane %v402, 2
      %v404 = vadd.f32 %v402, %v403
      %v405 = vrot.slane %v404, 1
      %v406 = vadd.f32 %v404, %v405
      %v407 = vadd.f32 %v323, %v327
      %v408 = vrot.slane %v407, 4
      %v409 = vadd.f32 %v407, %v408
      %v410 = vrot.slane %v409, 2
      %v411 = vadd.f32 %v409, %v410
      %v412 = vrot.slane %v411, 1
      %v413 = vadd.f32 %v411, %v412
      %v414 = vadd.f32 %v324, %v328
      %v415 = vrot.slane %v414, 4
      %v416 = vadd.f32 %v414, %v415
      %v417 = vrot.slane %v416, 2
      %v418 = vadd.f32 %v416, %v417
      %v419 = vrot.slane %v418, 1
      %v420 = vadd.f32 %v418, %v419
      %v421 = vadd.f32 %v325, %v329
      %v422 = vrot.slane %v421, 4
      %v423 = vadd.f32 %v421, %v422
      %v424 = vrot.slane %v423, 2
      %v425 = vadd.f32 %v423, %v424
      %v426 = vrot.slane %v425, 1
      %v427 = vadd.f32 %v425, %v426
      %v428 = vadd.f32 %v326, %v330
      %v429 = vrot.slane %v428, 4
      %v430 = vadd.f32 %v428, %v429
      %v431 = vrot.slane %v430, 2
      %v432 = vadd.f32 %v430, %v431
      %v433 = vrot.slane %v432, 1
      %v434 = vadd.f32 %v432, %v433
      %v435 = vadd.f32 %v331, %v335
      %v436 = vrot.slane %v435, 4
      %v437 = vadd.f32 %v435, %v436
      %v438 = vrot.slane %v437, 2
      %v439 = vadd.f32 %v437, %v438
      %v440 = vrot.slane %v439, 1
      %v441 = vadd.f32 %v439, %v440
      %v442 = vadd.f32 %v332, %v336
      %v443 = vrot.slane %v442, 4
      %v444 = vadd.f32 %v442, %v443
      %v445 = vrot.slane %v444, 2
      %v446 = vadd.f32 %v444, %v445
      %v447 = vrot.slane %v446, 1
      %v448 = vadd.f32 %v446, %v447
      %v449 = vadd.f32 %v333, %v337
      %v450 = vrot.slane %v449, 4
      %v451 = vadd.f32 %v449, %v450
      %v452 = vrot.slane %v451, 2
      %v453 = vadd.f32 %v451, %v452
      %v454 = vrot.slane %v453, 1
      %v455 = vadd.f32 %v453, %v454
      %v456 = vadd.f32 %v334, %v338
      %v457 = vrot.slane %v456, 4
      %v458 = vadd.f32 %v456, %v457
      %v459 = vrot.slane %v458, 2
      %v460 = vadd.f32 %v458, %v459
      %v461 = vrot.slane %v460, 1
      %v462 = vadd.f32 %v460, %v461
      %v463 = vadd.f32 %v339, %v343
      %v464 = vrot.slane %v463, 4
      %v465 = vadd.f32 %v463, %v464
      %v466 = vrot.slane %v465, 2
      %v467 = vadd.f32 %v465, %v466
      %v468 = vrot.slane %v467, 1
      %v469 = vadd.f32 %v467, %v468
      %v470 = vadd.f32 %v340, %v344
      %v471 = vrot.slane %v470, 4
      %v472 = vadd.f32 %v470, %v471
      %v473 = vrot.slane %v472, 2
      %v474 = vadd.f32 %v472, %v473
      %v475 = vrot.slane %v474, 1
      %v476 = vadd.f32 %v474, %v475
      %v477 = vadd.f32 %v341, %v345
      %v478 = vrot.slane %v477, 4
      %v479 = vadd.f32 %v477, %v478
      %v480 = vrot.slane %v479, 2
      %v481 = vadd.f32 %v479, %v480
      %v482 = vrot.slane %v481, 1
      %v483 = vadd.f32 %v481, %v482
      %v484 = vadd.f32 %v342, %v346
      %v485 = vrot.slane %v484, 4
      %v486 = vadd.f32 %v484, %v485
      %v487 = vrot.slane %v486, 2
      %v488 = vadd.f32 %v486, %v487
      %v489 = vrot.slane %v488, 1
      %v490 = vadd.f32 %v488, %v489
      %v491 = vadd.f32 %v347, %v351
      %v492 = vrot.slane %v491, 4
      %v493 = vadd.f32 %v491, %v492
      %v494 = vrot.slane %v493, 2
      %v495 = vadd.f32 %v493, %v494
      %v496 = vrot.slane %v495, 1
      %v497 = vadd.f32 %v495, %v496
      %v498 = vadd.f32 %v348, %v352
      %v499 = vrot.slane %v498, 4
      %v500 = vadd.f32 %v498, %v499
      %v501 = vrot.slane %v500, 2
      %v502 = vadd.f32 %v500, %v501
      %v503 = vrot.slane %v502, 1
      %v504 = vadd.f32 %v502, %v503
      %v505 = vadd.f32 %v349, %v353
      %v506 = vrot.slane %v505, 4
      %v507 = vadd.f32 %v505, %v506
      %v508 = vrot.slane %v507, 2
      %v509 = vadd.f32 %v507, %v508
      %v510 = vrot.slane %v509, 1
      %v511 = vadd.f32 %v509, %v510
      %v512 = vadd.f32 %v350, %v354
      %v513 = vrot.slane %v512, 4
      %v514 = vadd.f32 %v512, %v513
      %v515 = vrot.slane %v514, 2
      %v516 = vadd.f32 %v514, %v515
      %v517 = vrot.slane %v516, 1
      %v518 = vadd.f32 %v516, %v517
      %v519 = vadd.f32 %v355, %v359
      %v520 = vrot.slane %v519, 4
      %v521 = vadd.f32 %v519, %v520
      %v522 = vrot.slane %v521, 2
      %v523 = vadd.f32 %v521, %v522
      %v524 = vrot.slane %v523, 1
      %v525 = vadd.f32 %v523, %v524
      %v526 = vadd.f32 %v356, %v360
      %v527 = vrot.slane %v526, 4
      %v528 = vadd.f32 %v526, %v527
      %v529 = vrot.slane %v528, 2
      %v530 = vadd.f32 %v528, %v529
      %v531 = vrot.slane %v530, 1
      %v532 = vadd.f32 %v530, %v531
      %v533 = vadd.f32 %v357, %v361
      %v534 = vrot.slane %v533, 4
      %v535 = vadd.f32 %v533, %v534
      %v536 = vrot.slane %v535, 2
      %v537 = vadd.f32 %v535, %v536
      %v538 = vrot.slane %v537, 1
      %v539 = vadd.f32 %v537, %v538
      %v540 = vadd.f32 %v358, %v362
      %v541 = vrot.slane %v540, 4
      %v542 = vadd.f32 %v540, %v541
      %v543 = vrot.slane %v542, 2
      %v544 = vadd.f32 %v542, %v543
      %v545 = vrot.slane %v544, 1
      %v546 = vadd.f32 %v544, %v545
      %v547 = vadd.f32 %v363, %v367
      %v548 = vrot.slane %v547, 4
      %v549 = vadd.f32 %v547, %v548
      %v550 = vrot.slane %v549, 2
      %v551 = vadd.f32 %v549, %v550
      %v552 = vrot.slane %v551, 1
      %v553 = vadd.f32 %v551, %v552
      %v554 = vadd.f32 %v364, %v368
      %v555 = vrot.slane %v554, 4
      %v556 = vadd.f32 %v554, %v555
      %v557 = vrot.slane %v556, 2
      %v558 = vadd.f32 %v556, %v557
      %v559 = vrot.slane %v558, 1
      %v560 = vadd.f32 %v558, %v559
      %v561 = vadd.f32 %v365, %v369
      %v562 = vrot.slane %v561, 4
      %v563 = vadd.f32 %v561, %v562
      %v564 = vrot.slane %v563, 2
      %v565 = vadd.f32 %v563, %v564
      %v566 = vrot.slane %v565, 1
      %v567 = vadd.f32 %v565, %v566
      %v568 = vadd.f32 %v366, %v370
      %v569 = vrot.slane %v568, 4
      %v570 = vadd.f32 %v568, %v569
      %v571 = vrot.slane %v570, 2
      %v572 = vadd.f32 %v570, %v571
      %v573 = vrot.slane %v572, 1
      %v574 = vadd.f32 %v572, %v573
      %v575 = vadd.f32 %v371, %v375
      %v576 = vrot.slane %v575, 4
      %v577 = vadd.f32 %v575, %v576
      %v578 = vrot.slane %v577, 2
      %v579 = vadd.f32 %v577, %v578
      %v580 = vrot.slane %v579, 1
      %v581 = vadd.f32 %v579, %v580
      %v582 = vadd.f32 %v372, %v376
      %v583 = vrot.slane %v582, 4
      %v584 = vadd.f32 %v582, %v583
      %v585 = vrot.slane %v584, 2
      %v586 = vadd.f32 %v584, %v585
      %v587 = vrot.slane %v586, 1
      %v588 = vadd.f32 %v586, %v587
      %v589 = vadd.f32 %v373, %v377
      %v590 = vrot.slane %v589, 4
      %v591 = vadd.f32 %v589, %v590
      %v592 = vrot.slane %v591, 2
      %v593 = vadd.f32 %v591, %v592
      %v594 = vrot.slane %v593, 1
      %v595 = vadd.f32 %v593, %v594
      %v596 = vadd.f32 %v374, %v378
      %v597 = vrot.slane %v596, 4
      %v598 = vadd.f32 %v596, %v597
      %v599 = vrot.slane %v598, 2
      %v600 = vadd.f32 %v598, %v599
      %v601 = vrot.slane %v600, 1
      %v602 = vadd.f32 %v600, %v601
      %v603 = vmul.f32 %v385, 0.0625
      %v604 = vmul.f32 %v392, 0.0625
      %v605 = vmul.f32 %v399, 0.0625
      %v606 = vmul.f32 %v406, 0.0625
      %v607 = vmul.f32 %v413, 0.0625
      %v608 = vmul.f32 %v420, 0.0625
      %v609 = vmul.f32 %v427, 0.0625
      %v610 = vmul.f32 %v434, 0.0625
      %v611 = vmul.f32 %v441, 0.0625
      %v612 = vmul.f32 %v448, 0.0625
      %v613 = vmul.f32 %v455, 0.0625
      %v614 = vmul.f32 %v462, 0.0625
      %v615 = vmul.f32 %v469, 0.0625
      %v616 = vmul.f32 %v476, 0.0625
      %v617 = vmul.f32 %v483, 0.0625
      %v618 = vmul.f32 %v490, 0.0625
      %v619 = vmul.f32 %v497, 0.0625
      %v620 = vmul.f32 %v504, 0.0625
      %v621 = vmul.f32 %v511, 0.0625
      %v622 = vmul.f32 %v518, 0.0625
      %v623 = vmul.f32 %v525, 0.0625
      %v624 = vmul.f32 %v532, 0.0625
      %v625 = vmul.f32 %v539, 0.0625
      %v626 = vmul.f32 %v546, 0.0625
      %v627 = vmul.f32 %v553, 0.0625
      %v628 = vmul.f32 %v560, 0.0625
      %v629 = vmul.f32 %v567, 0.0625
      %v630 = vmul.f32 %v574, 0.0625
      %v631 = vmul.f32 %v581, 0.0625
      %v632 = vmul.f32 %v588, 0.0625
      %v633 = vmul.f32 %v595, 0.0625
      %v634 = vmul.f32 %v602, 0.0625
      %v635 = vpack.c.bf16 %v603, %v603
      %v636 = vpack.c.bf16 %v604, %v604
      %v637 = vpack.c.bf16 %v605, %v605
      %v638 = vpack.c.bf16 %v606, %v606
      %v639 = vpack.c.bf16 %v607, %v607
      %v640 = vpack.c.bf16 %v608, %v608
      %v641 = vpack.c.bf16 %v609, %v609
      %v642 = vpack.c.bf16 %v610, %v610
      %v643 = vpack.c.bf16 %v611, %v611
      %v644 = vpack.c.bf16 %v612, %v612
      %v645 = vpack.c.bf16 %v613, %v613
      %v646 = vpack.c.bf16 %v614, %v614
      %v647 = vpack.c.bf16 %v615, %v615
      %v648 = vpack.c.bf16 %v616, %v616
      %v649 = vpack.c.bf16 %v617, %v617
      %v650 = vpack.c.bf16 %v618, %v618
      %v651 = vpack.c.bf16 %v619, %v619
      %v652 = vpack.c.bf16 %v620, %v620
      %v653 = vpack.c.bf16 %v621, %v621
      %v654 = vpack.c.bf16 %v622, %v622
      %v655 = vpack.c.bf16 %v623, %v623
      %v656 = vpack.c.bf16 %v624, %v624
      %v657 = vpack.c.bf16 %v625, %v625
      %v658 = vpack.c.bf16 %v626, %v626
      %v659 = vpack.c.bf16 %v627, %v627
      %v660 = vpack.c.bf16 %v628, %v628
      %v661 = vpack.c.bf16 %v629, %v629
      %v662 = vpack.c.bf16 %v630, %v630
      %v663 = vpack.c.bf16 %v631, %v631
      %v664 = vpack.c.bf16 %v632, %v632
      %v665 = vpack.c.bf16 %v633, %v633
      %v666 = vpack.c.bf16 %v634, %v634
      %v667 = vld [vmem:[%s1] sm:$0xff]
      %v668 = vld [vmem:[%s1 + $0x8] sm:$0xff]
      %v669 = vld [vmem:[%s1 + $0x10] sm:$0xff]
      %v670 = vld [vmem:[%s1 + $0x18] sm:$0xff]
      %v671 = vld [vmem:[%s1 + $0x20] sm:$0xff]
      %v672 = vld [vmem:[%s1 + $0x28] sm:$0xff]
      %v673 = vld [vmem:[%s1 + $0x30] sm:$0xff]
      %v674 = vld [vmem:[%s1 + $0x38] sm:$0xff]
      %v675 = vld [vmem:[%s1 + $0x40] sm:$0xff]
      %v676 = vld [vmem:[%s1 + $0x48] sm:$0xff]
      %v677 = vld [vmem:[%s1 + $0x50] sm:$0xff]
      %v678 = vld [vmem:[%s1 + $0x58] sm:$0xff]
      %v679 = vld [vmem:[%s1 + $0x60] sm:$0xff]
      %v680 = vld [vmem:[%s1 + $0x68] sm:$0xff]
      %v681 = vld [vmem:[%s1 + $0x70] sm:$0xff]
      %v682 = vld [vmem:[%s1 + $0x78] sm:$0xff]
      %v683 = vld [vmem:[%s1 + $0x80] sm:$0xff]
      %v684 = vld [vmem:[%s1 + $0x88] sm:$0xff]
      %v685 = vld [vmem:[%s1 + $0x90] sm:$0xff]
      %v686 = vld [vmem:[%s1 + $0x98] sm:$0xff]
      %v687 = vld [vmem:[%s1 + $0xa0] sm:$0xff]
      %v688 = vld [vmem:[%s1 + $0xa8] sm:$0xff]
      %v689 = vld [vmem:[%s1 + $0xb0] sm:$0xff]
      %v690 = vld [vmem:[%s1 + $0xb8] sm:$0xff]
      %v691 = vld [vmem:[%s1 + $0xc0] sm:$0xff]
      %v692 = vld [vmem:[%s1 + $0xc8] sm:$0xff]
      %v693 = vld [vmem:[%s1 + $0xd0] sm:$0xff]
      %v694 = vld [vmem:[%s1 + $0xd8] sm:$0xff]
      %v695 = vld [vmem:[%s1 + $0xe0] sm:$0xff]
      %v696 = vld [vmem:[%s1 + $0xe8] sm:$0xff]
      %v697 = vld [vmem:[%s1 + $0xf0] sm:$0xff]
      %v698 = vld [vmem:[%s1 + $0xf8] sm:$0xff]
      %v699 = vld [vmem:[%s1 + $0x100] sm:$0xff]
      %v700 = vld [vmem:[%s1 + $0x108] sm:$0xff]
      %v701 = vld [vmem:[%s1 + $0x110] sm:$0xff]
      %v702 = vld [vmem:[%s1 + $0x118] sm:$0xff]
      %v703 = vld [vmem:[%s1 + $0x120] sm:$0xff]
      %v704 = vld [vmem:[%s1 + $0x128] sm:$0xff]
      %v705 = vld [vmem:[%s1 + $0x130] sm:$0xff]
      %v706 = vld [vmem:[%s1 + $0x138] sm:$0xff]
      %v707 = vld [vmem:[%s1 + $0x140] sm:$0xff]
      %v708 = vld [vmem:[%s1 + $0x148] sm:$0xff]
      %v709 = vld [vmem:[%s1 + $0x150] sm:$0xff]
      %v710 = vld [vmem:[%s1 + $0x158] sm:$0xff]
      %v711 = vld [vmem:[%s1 + $0x160] sm:$0xff]
      %v712 = vld [vmem:[%s1 + $0x168] sm:$0xff]
      %v713 = vld [vmem:[%s1 + $0x170] sm:$0xff]
      %v714 = vld [vmem:[%s1 + $0x178] sm:$0xff]
      %v715 = vld [vmem:[%s1 + $0x180] sm:$0xff]
      %v716 = vld [vmem:[%s1 + $0x188] sm:$0xff]
      %v717 = vld [vmem:[%s1 + $0x190] sm:$0xff]
      %v718 = vld [vmem:[%s1 + $0x198] sm:$0xff]
      %v719 = vld [vmem:[%s1 + $0x1a0] sm:$0xff]
      %v720 = vld [vmem:[%s1 + $0x1a8] sm:$0xff]
      %v721 = vld [vmem:[%s1 + $0x1b0] sm:$0xff]
      %v722 = vld [vmem:[%s1 + $0x1b8] sm:$0xff]
      %v723 = vld [vmem:[%s1 + $0x1c0] sm:$0xff]
      %v724 = vld [vmem:[%s1 + $0x1c8] sm:$0xff]
      %v725 = vld [vmem:[%s1 + $0x1d0] sm:$0xff]
      %v726 = vld [vmem:[%s1 + $0x1d8] sm:$0xff]
      %v727 = vld [vmem:[%s1 + $0x1e0] sm:$0xff]
      %v728 = vld [vmem:[%s1 + $0x1e8] sm:$0xff]
      %v729 = vld [vmem:[%s1 + $0x1f0] sm:$0xff]
      %v730 = vld [vmem:[%s1 + $0x1f8] sm:$0xff]
      %v731 = vld [vmem:[%s1 + $0x200] sm:$0xff]
      %v732 = vld [vmem:[%s1 + $0x208] sm:$0xff]
      %v733 = vld [vmem:[%s1 + $0x210] sm:$0xff]
      %v734 = vld [vmem:[%s1 + $0x218] sm:$0xff]
      %v735 = vld [vmem:[%s1 + $0x220] sm:$0xff]
      %v736 = vld [vmem:[%s1 + $0x228] sm:$0xff]
      %v737 = vld [vmem:[%s1 + $0x230] sm:$0xff]
      %v738 = vld [vmem:[%s1 + $0x238] sm:$0xff]
      %v739 = vld [vmem:[%s1 + $0x240] sm:$0xff]
      %v740 = vld [vmem:[%s1 + $0x248] sm:$0xff]
      %v741 = vld [vmem:[%s1 + $0x250] sm:$0xff]
      %v742 = vld [vmem:[%s1 + $0x258] sm:$0xff]
      %v743 = vld [vmem:[%s1 + $0x260] sm:$0xff]
      %v744 = vld [vmem:[%s1 + $0x268] sm:$0xff]
      %v745 = vld [vmem:[%s1 + $0x270] sm:$0xff]
      %v746 = vld [vmem:[%s1 + $0x278] sm:$0xff]
      %v747 = vld [vmem:[%s1 + $0x280] sm:$0xff]
      %v748 = vld [vmem:[%s1 + $0x288] sm:$0xff]
      %v749 = vld [vmem:[%s1 + $0x290] sm:$0xff]
      %v750 = vld [vmem:[%s1 + $0x298] sm:$0xff]
      %v751 = vld [vmem:[%s1 + $0x2a0] sm:$0xff]
      %v752 = vld [vmem:[%s1 + $0x2a8] sm:$0xff]
      %v753 = vld [vmem:[%s1 + $0x2b0] sm:$0xff]
      %v754 = vld [vmem:[%s1 + $0x2b8] sm:$0xff]
      %v755 = vld [vmem:[%s1 + $0x2c0] sm:$0xff]
      %v756 = vld [vmem:[%s1 + $0x2c8] sm:$0xff]
      %v757 = vld [vmem:[%s1 + $0x2d0] sm:$0xff]
      %v758 = vld [vmem:[%s1 + $0x2d8] sm:$0xff]
      %v759 = vld [vmem:[%s1 + $0x2e0] sm:$0xff]
      %v760 = vld [vmem:[%s1 + $0x2e8] sm:$0xff]
      %v761 = vld [vmem:[%s1 + $0x2f0] sm:$0xff]
      %v762 = vld [vmem:[%s1 + $0x2f8] sm:$0xff]
      %v763 = vld [vmem:[%s1 + $0x300] sm:$0xff]
      %v764 = vld [vmem:[%s1 + $0x308] sm:$0xff]
      %v765 = vld [vmem:[%s1 + $0x310] sm:$0xff]
      %v766 = vld [vmem:[%s1 + $0x318] sm:$0xff]
      %v767 = vld [vmem:[%s1 + $0x320] sm:$0xff]
      %v768 = vld [vmem:[%s1 + $0x328] sm:$0xff]
      %v769 = vld [vmem:[%s1 + $0x330] sm:$0xff]
      %v770 = vld [vmem:[%s1 + $0x338] sm:$0xff]
      %v771 = vld [vmem:[%s1 + $0x340] sm:$0xff]
      %v772 = vld [vmem:[%s1 + $0x348] sm:$0xff]
      %v773 = vld [vmem:[%s1 + $0x350] sm:$0xff]
      %v774 = vld [vmem:[%s1 + $0x358] sm:$0xff]
      %v775 = vld [vmem:[%s1 + $0x360] sm:$0xff]
      %v776 = vld [vmem:[%s1 + $0x368] sm:$0xff]
      %v777 = vld [vmem:[%s1 + $0x370] sm:$0xff]
      %v778 = vld [vmem:[%s1 + $0x378] sm:$0xff]
      %v779 = vld [vmem:[%s1 + $0x380] sm:$0xff]
      %v780 = vld [vmem:[%s1 + $0x388] sm:$0xff]
      %v781 = vld [vmem:[%s1 + $0x390] sm:$0xff]
      %v782 = vld [vmem:[%s1 + $0x398] sm:$0xff]
      %v783 = vld [vmem:[%s1 + $0x3a0] sm:$0xff]
      %v784 = vld [vmem:[%s1 + $0x3a8] sm:$0xff]
      %v785 = vld [vmem:[%s1 + $0x3b0] sm:$0xff]
      %v786 = vld [vmem:[%s1 + $0x3b8] sm:$0xff]
      %v787 = vld [vmem:[%s1 + $0x3c0] sm:$0xff]
      %v788 = vld [vmem:[%s1 + $0x3c8] sm:$0xff]
      %v789 = vld [vmem:[%s1 + $0x3d0] sm:$0xff]
      %v790 = vld [vmem:[%s1 + $0x3d8] sm:$0xff]
      %v791 = vld [vmem:[%s1 + $0x3e0] sm:$0xff]
      %v792 = vld [vmem:[%s1 + $0x3e8] sm:$0xff]
      %v793 = vld [vmem:[%s1 + $0x3f0] sm:$0xff]
      %v794 = vld [vmem:[%s1 + $0x3f8] sm:$0xff]
      %v795 = vld [vmem:[%s2] sm:$0xf]
      %v797 = vlaneseq
      %v798 = vshrl.u32 %v797, 7
      %v799 = vsub.s32 0, %v798
      %v800 = vrot.slane %v795, %v799
      %v801 = vlaneseq
      %v802 = vshrl.u32 %v801, 7
      %v803 = vsub.s32 1, %v802
      %v804 = vrot.slane %v795, %v803
      %v805 = vlaneseq
      %v806 = vshrl.u32 %v805, 7
      %v807 = vsub.s32 2, %v806
      %v808 = vrot.slane %v795, %v807
      %v809 = vlaneseq
      %v810 = vshrl.u32 %v809, 7
      %v811 = vsub.s32 3, %v810
      %v812 = vrot.slane %v795, %v811
      %v849 = vunpack.c.l.b16 %v635
      %v850 = vunpack.c.l.b16 %v636
      %v851 = vunpack.c.l.b16 %v637
      %v852 = vunpack.c.l.b16 %v638
      %v853 = vunpack.c.l.b16 %v639
      %v854 = vunpack.c.l.b16 %v640
      %v855 = vunpack.c.l.b16 %v641
      %v856 = vunpack.c.l.b16 %v642
      %v857 = vunpack.c.l.b16 %v643
      %v858 = vunpack.c.l.b16 %v644
      %v859 = vunpack.c.l.b16 %v645
      %v860 = vunpack.c.l.b16 %v646
      %v861 = vunpack.c.l.b16 %v647
      %v862 = vunpack.c.l.b16 %v648
      %v863 = vunpack.c.l.b16 %v649
      %v864 = vunpack.c.l.b16 %v650
      %v865 = vunpack.c.l.b16 %v651
      %v866 = vunpack.c.l.b16 %v652
      %v867 = vunpack.c.l.b16 %v653
      %v868 = vunpack.c.l.b16 %v654
      %v869 = vunpack.c.l.b16 %v655
      %v870 = vunpack.c.l.b16 %v656
      %v871 = vunpack.c.l.b16 %v657
      %v872 = vunpack.c.l.b16 %v658
      %v873 = vunpack.c.l.b16 %v659
      %v874 = vunpack.c.l.b16 %v660
      %v875 = vunpack.c.l.b16 %v661
      %v876 = vunpack.c.l.b16 %v662
      %v877 = vunpack.c.l.b16 %v663
      %v878 = vunpack.c.l.b16 %v664
      %v879 = vunpack.c.l.b16 %v665
      %v880 = vunpack.c.l.b16 %v666
      %vm881 = vcmask 1041409
      %v882 = vsel %vm881, %v853, %v849
      %vm883 = vcmask 1042434
      %v884 = vsel %vm883, %v857, %v882
      %vm885 = vcmask 1043459
      %v886 = vsel %vm885, %v861, %v884
      %vm887 = vcmask 1044484
      %v888 = vsel %vm887, %v865, %v886
      %vm889 = vcmask 1045509
      %v890 = vsel %vm889, %v869, %v888
      %vm891 = vcmask 1046534
      %v892 = vsel %vm891, %v873, %v890
      %vm893 = vcmask 1047559
      %v894 = vsel %vm893, %v877, %v892
      %v895 = vsel %vm881, %v854, %v850
      %v896 = vsel %vm883, %v858, %v895
      %v897 = vsel %vm885, %v862, %v896
      %v898 = vsel %vm887, %v866, %v897
      %v899 = vsel %vm889, %v870, %v898
      %v900 = vsel %vm891, %v874, %v899
      %v901 = vsel %vm893, %v878, %v900
      %v902 = vsel %vm881, %v855, %v851
      %v903 = vsel %vm883, %v859, %v902
      %v904 = vsel %vm885, %v863, %v903
      %v905 = vsel %vm887, %v867, %v904
      %v906 = vsel %vm889, %v871, %v905
      %v907 = vsel %vm891, %v875, %v906
      %v908 = vsel %vm893, %v879, %v907
      %v909 = vsel %vm881, %v856, %v852
      %v910 = vsel %vm883, %v860, %v909
      %v911 = vsel %vm885, %v864, %v910
      %v912 = vsel %vm887, %v868, %v911
      %v913 = vsel %vm889, %v872, %v912
      %v914 = vsel %vm891, %v876, %v913
      %v915 = vsel %vm893, %v880, %v914
      %v916 = vpack.c.b16 %v894, %v894
      %v917 = vpack.c.b16 %v901, %v901
      %v918 = vpack.c.b16 %v908, %v908
      %v919 = vpack.c.b16 %v915, %v915
      %v1052 = vunpack.c.l.b16 %v667
      %v1053 = vunpack.c.h.b16 %v667
      %v1054 = vunpack.c.l.b16 %v668
      %v1055 = vunpack.c.h.b16 %v668
      %v1056 = vunpack.c.l.b16 %v669
      %v1057 = vunpack.c.h.b16 %v669
      %v1058 = vunpack.c.l.b16 %v670
      %v1059 = vunpack.c.h.b16 %v670
      %v1060 = vunpack.c.l.b16 %v671
      %v1061 = vunpack.c.h.b16 %v671
      %v1062 = vunpack.c.l.b16 %v672
      %v1063 = vunpack.c.h.b16 %v672
      %v1064 = vunpack.c.l.b16 %v673
      %v1065 = vunpack.c.h.b16 %v673
      %v1066 = vunpack.c.l.b16 %v674
      %v1067 = vunpack.c.h.b16 %v674
      %v1068 = vunpack.c.l.b16 %v675
      %v1069 = vunpack.c.h.b16 %v675
      %v1070 = vunpack.c.l.b16 %v676
      %v1071 = vunpack.c.h.b16 %v676
      %v1072 = vunpack.c.l.b16 %v677
      %v1073 = vunpack.c.h.b16 %v677
      %v1074 = vunpack.c.l.b16 %v678
      %v1075 = vunpack.c.h.b16 %v678
      %v1076 = vunpack.c.l.b16 %v679
      %v1077 = vunpack.c.h.b16 %v679
      %v1078 = vunpack.c.l.b16 %v680
      %v1079 = vunpack.c.h.b16 %v680
      %v1080 = vunpack.c.l.b16 %v681
      %v1081 = vunpack.c.h.b16 %v681
      %v1082 = vunpack.c.l.b16 %v682
      %v1083 = vunpack.c.h.b16 %v682
      %v1084 = vunpack.c.l.b16 %v683
      %v1085 = vunpack.c.h.b16 %v683
      %v1086 = vunpack.c.l.b16 %v684
      %v1087 = vunpack.c.h.b16 %v684
      %v1088 = vunpack.c.l.b16 %v685
      %v1089 = vunpack.c.h.b16 %v685
      %v1090 = vunpack.c.l.b16 %v686
      %v1091 = vunpack.c.h.b16 %v686
      %v1092 = vunpack.c.l.b16 %v687
      %v1093 = vunpack.c.h.b16 %v687
      %v1094 = vunpack.c.l.b16 %v688
      %v1095 = vunpack.c.h.b16 %v688
      %v1096 = vunpack.c.l.b16 %v689
      %v1097 = vunpack.c.h.b16 %v689
      %v1098 = vunpack.c.l.b16 %v690
      %v1099 = vunpack.c.h.b16 %v690
      %v1100 = vunpack.c.l.b16 %v691
      %v1101 = vunpack.c.h.b16 %v691
      %v1102 = vunpack.c.l.b16 %v692
      %v1103 = vunpack.c.h.b16 %v692
      %v1104 = vunpack.c.l.b16 %v693
      %v1105 = vunpack.c.h.b16 %v693
      %v1106 = vunpack.c.l.b16 %v694
      %v1107 = vunpack.c.h.b16 %v694
      %v1108 = vunpack.c.l.b16 %v695
      %v1109 = vunpack.c.h.b16 %v695
      %v1110 = vunpack.c.l.b16 %v696
      %v1111 = vunpack.c.h.b16 %v696
      %v1112 = vunpack.c.l.b16 %v697
      %v1113 = vunpack.c.h.b16 %v697
      %v1114 = vunpack.c.l.b16 %v698
      %v1115 = vunpack.c.h.b16 %v698
      %v1116 = vunpack.c.l.b16 %v699
      %v1117 = vunpack.c.h.b16 %v699
      %v1118 = vunpack.c.l.b16 %v700
      %v1119 = vunpack.c.h.b16 %v700
      %v1120 = vunpack.c.l.b16 %v701
      %v1121 = vunpack.c.h.b16 %v701
      %v1122 = vunpack.c.l.b16 %v702
      %v1123 = vunpack.c.h.b16 %v702
      %v1124 = vunpack.c.l.b16 %v703
      %v1125 = vunpack.c.h.b16 %v703
      %v1126 = vunpack.c.l.b16 %v704
      %v1127 = vunpack.c.h.b16 %v704
      %v1128 = vunpack.c.l.b16 %v705
      %v1129 = vunpack.c.h.b16 %v705
      %v1130 = vunpack.c.l.b16 %v706
      %v1131 = vunpack.c.h.b16 %v706
      %v1132 = vunpack.c.l.b16 %v707
      %v1133 = vunpack.c.h.b16 %v707
      %v1134 = vunpack.c.l.b16 %v708
      %v1135 = vunpack.c.h.b16 %v708
      %v1136 = vunpack.c.l.b16 %v709
      %v1137 = vunpack.c.h.b16 %v709
      %v1138 = vunpack.c.l.b16 %v710
      %v1139 = vunpack.c.h.b16 %v710
      %v1140 = vunpack.c.l.b16 %v711
      %v1141 = vunpack.c.h.b16 %v711
      %v1142 = vunpack.c.l.b16 %v712
      %v1143 = vunpack.c.h.b16 %v712
      %v1144 = vunpack.c.l.b16 %v713
      %v1145 = vunpack.c.h.b16 %v713
      %v1146 = vunpack.c.l.b16 %v714
      %v1147 = vunpack.c.h.b16 %v714
      %v1148 = vunpack.c.l.b16 %v715
      %v1149 = vunpack.c.h.b16 %v715
      %v1150 = vunpack.c.l.b16 %v716
      %v1151 = vunpack.c.h.b16 %v716
      %v1152 = vunpack.c.l.b16 %v717
      %v1153 = vunpack.c.h.b16 %v717
      %v1154 = vunpack.c.l.b16 %v718
      %v1155 = vunpack.c.h.b16 %v718
      %v1156 = vunpack.c.l.b16 %v719
      %v1157 = vunpack.c.h.b16 %v719
      %v1158 = vunpack.c.l.b16 %v720
      %v1159 = vunpack.c.h.b16 %v720
      %v1160 = vunpack.c.l.b16 %v721
      %v1161 = vunpack.c.h.b16 %v721
      %v1162 = vunpack.c.l.b16 %v722
      %v1163 = vunpack.c.h.b16 %v722
      %v1164 = vunpack.c.l.b16 %v723
      %v1165 = vunpack.c.h.b16 %v723
      %v1166 = vunpack.c.l.b16 %v724
      %v1167 = vunpack.c.h.b16 %v724
      %v1168 = vunpack.c.l.b16 %v725
      %v1169 = vunpack.c.h.b16 %v725
      %v1170 = vunpack.c.l.b16 %v726
      %v1171 = vunpack.c.h.b16 %v726
      %v1172 = vunpack.c.l.b16 %v727
      %v1173 = vunpack.c.h.b16 %v727
      %v1174 = vunpack.c.l.b16 %v728
      %v1175 = vunpack.c.h.b16 %v728
      %v1176 = vunpack.c.l.b16 %v729
      %v1177 = vunpack.c.h.b16 %v729
      %v1178 = vunpack.c.l.b16 %v730
      %v1179 = vunpack.c.h.b16 %v730
      %v1180 = vunpack.c.l.b16 %v731
      %v1181 = vunpack.c.h.b16 %v731
      %v1182 = vunpack.c.l.b16 %v732
      %v1183 = vunpack.c.h.b16 %v732
      %v1184 = vunpack.c.l.b16 %v733
      %v1185 = vunpack.c.h.b16 %v733
      %v1186 = vunpack.c.l.b16 %v734
      %v1187 = vunpack.c.h.b16 %v734
      %v1188 = vunpack.c.l.b16 %v735
      %v1189 = vunpack.c.h.b16 %v735
      %v1190 = vunpack.c.l.b16 %v736
      %v1191 = vunpack.c.h.b16 %v736
      %v1192 = vunpack.c.l.b16 %v737
      %v1193 = vunpack.c.h.b16 %v737
      %v1194 = vunpack.c.l.b16 %v738
      %v1195 = vunpack.c.h.b16 %v738
      %v1196 = vunpack.c.l.b16 %v739
      %v1197 = vunpack.c.h.b16 %v739
      %v1198 = vunpack.c.l.b16 %v740
      %v1199 = vunpack.c.h.b16 %v740
      %v1200 = vunpack.c.l.b16 %v741
      %v1201 = vunpack.c.h.b16 %v741
      %v1202 = vunpack.c.l.b16 %v742
      %v1203 = vunpack.c.h.b16 %v742
      %v1204 = vunpack.c.l.b16 %v743
      %v1205 = vunpack.c.h.b16 %v743
      %v1206 = vunpack.c.l.b16 %v744
      %v1207 = vunpack.c.h.b16 %v744
      %v1208 = vunpack.c.l.b16 %v745
      %v1209 = vunpack.c.h.b16 %v745
      %v1210 = vunpack.c.l.b16 %v746
      %v1211 = vunpack.c.h.b16 %v746
      %v1212 = vunpack.c.l.b16 %v747
      %v1213 = vunpack.c.h.b16 %v747
      %v1214 = vunpack.c.l.b16 %v748
      %v1215 = vunpack.c.h.b16 %v748
      %v1216 = vunpack.c.l.b16 %v749
      %v1217 = vunpack.c.h.b16 %v749
      %v1218 = vunpack.c.l.b16 %v750
      %v1219 = vunpack.c.h.b16 %v750
      %v1220 = vunpack.c.l.b16 %v751
      %v1221 = vunpack.c.h.b16 %v751
      %v1222 = vunpack.c.l.b16 %v752
      %v1223 = vunpack.c.h.b16 %v752
      %v1224 = vunpack.c.l.b16 %v753
      %v1225 = vunpack.c.h.b16 %v753
      %v1226 = vunpack.c.l.b16 %v754
      %v1227 = vunpack.c.h.b16 %v754
      %v1228 = vunpack.c.l.b16 %v755
      %v1229 = vunpack.c.h.b16 %v755
      %v1230 = vunpack.c.l.b16 %v756
      %v1231 = vunpack.c.h.b16 %v756
      %v1232 = vunpack.c.l.b16 %v757
      %v1233 = vunpack.c.h.b16 %v757
      %v1234 = vunpack.c.l.b16 %v758
      %v1235 = vunpack.c.h.b16 %v758
      %v1236 = vunpack.c.l.b16 %v759
      %v1237 = vunpack.c.h.b16 %v759
      %v1238 = vunpack.c.l.b16 %v760
      %v1239 = vunpack.c.h.b16 %v760
      %v1240 = vunpack.c.l.b16 %v761
      %v1241 = vunpack.c.h.b16 %v761
      %v1242 = vunpack.c.l.b16 %v762
      %v1243 = vunpack.c.h.b16 %v762
      %v1244 = vunpack.c.l.b16 %v763
      %v1245 = vunpack.c.h.b16 %v763
      %v1246 = vunpack.c.l.b16 %v764
      %v1247 = vunpack.c.h.b16 %v764
      %v1248 = vunpack.c.l.b16 %v765
      %v1249 = vunpack.c.h.b16 %v765
      %v1250 = vunpack.c.l.b16 %v766
      %v1251 = vunpack.c.h.b16 %v766
      %v1252 = vunpack.c.l.b16 %v767
      %v1253 = vunpack.c.h.b16 %v767
      %v1254 = vunpack.c.l.b16 %v768
      %v1255 = vunpack.c.h.b16 %v768
      %v1256 = vunpack.c.l.b16 %v769
      %v1257 = vunpack.c.h.b16 %v769
      %v1258 = vunpack.c.l.b16 %v770
      %v1259 = vunpack.c.h.b16 %v770
      %v1260 = vunpack.c.l.b16 %v771
      %v1261 = vunpack.c.h.b16 %v771
      %v1262 = vunpack.c.l.b16 %v772
      %v1263 = vunpack.c.h.b16 %v772
      %v1264 = vunpack.c.l.b16 %v773
      %v1265 = vunpack.c.h.b16 %v773
      %v1266 = vunpack.c.l.b16 %v774
      %v1267 = vunpack.c.h.b16 %v774
      %v1268 = vunpack.c.l.b16 %v775
      %v1269 = vunpack.c.h.b16 %v775
      %v1270 = vunpack.c.l.b16 %v776
      %v1271 = vunpack.c.h.b16 %v776
      %v1272 = vunpack.c.l.b16 %v777
      %v1273 = vunpack.c.h.b16 %v777
      %v1274 = vunpack.c.l.b16 %v778
      %v1275 = vunpack.c.h.b16 %v778
      %v1276 = vunpack.c.l.b16 %v779
      %v1277 = vunpack.c.h.b16 %v779
      %v1278 = vunpack.c.l.b16 %v780
      %v1279 = vunpack.c.h.b16 %v780
      %v1280 = vunpack.c.l.b16 %v781
      %v1281 = vunpack.c.h.b16 %v781
      %v1282 = vunpack.c.l.b16 %v782
      %v1283 = vunpack.c.h.b16 %v782
      %v1284 = vunpack.c.l.b16 %v783
      %v1285 = vunpack.c.h.b16 %v783
      %v1286 = vunpack.c.l.b16 %v784
      %v1287 = vunpack.c.h.b16 %v784
      %v1288 = vunpack.c.l.b16 %v785
      %v1289 = vunpack.c.h.b16 %v785
      %v1290 = vunpack.c.l.b16 %v786
      %v1291 = vunpack.c.h.b16 %v786
      %v1292 = vunpack.c.l.b16 %v787
      %v1293 = vunpack.c.h.b16 %v787
      %v1294 = vunpack.c.l.b16 %v788
      %v1295 = vunpack.c.h.b16 %v788
      %v1296 = vunpack.c.l.b16 %v789
      %v1297 = vunpack.c.h.b16 %v789
      %v1298 = vunpack.c.l.b16 %v790
      %v1299 = vunpack.c.h.b16 %v790
      %v1300 = vunpack.c.l.b16 %v791
      %v1301 = vunpack.c.h.b16 %v791
      %v1302 = vunpack.c.l.b16 %v792
      %v1303 = vunpack.c.h.b16 %v792
      %v1304 = vunpack.c.l.b16 %v793
      %v1305 = vunpack.c.h.b16 %v793
      %v1306 = vunpack.c.l.b16 %v794
      %v1307 = vunpack.c.h.b16 %v794
      %v1308 = vpack.c.b16 %v1056, %v1052
      %v1309 = vpack.c.b16 %v1057, %v1053
      %v1310 = vpack.c.b16 %v1058, %v1054
      %v1311 = vpack.c.b16 %v1059, %v1055
      %v1312 = vpack.c.b16 %v1064, %v1060
      %v1313 = vpack.c.b16 %v1065, %v1061
      %v1314 = vpack.c.b16 %v1066, %v1062
      %v1315 = vpack.c.b16 %v1067, %v1063
      %v1316 = vpack.c.b16 %v1072, %v1068
      %v1317 = vpack.c.b16 %v1073, %v1069
      %v1318 = vpack.c.b16 %v1074, %v1070
      %v1319 = vpack.c.b16 %v1075, %v1071
      %v1320 = vpack.c.b16 %v1080, %v1076
      %v1321 = vpack.c.b16 %v1081, %v1077
      %v1322 = vpack.c.b16 %v1082, %v1078
      %v1323 = vpack.c.b16 %v1083, %v1079
      %v1324 = vpack.c.b16 %v1088, %v1084
      %v1325 = vpack.c.b16 %v1089, %v1085
      %v1326 = vpack.c.b16 %v1090, %v1086
      %v1327 = vpack.c.b16 %v1091, %v1087
      %v1328 = vpack.c.b16 %v1096, %v1092
      %v1329 = vpack.c.b16 %v1097, %v1093
      %v1330 = vpack.c.b16 %v1098, %v1094
      %v1331 = vpack.c.b16 %v1099, %v1095
      %v1332 = vpack.c.b16 %v1104, %v1100
      %v1333 = vpack.c.b16 %v1105, %v1101
      %v1334 = vpack.c.b16 %v1106, %v1102
      %v1335 = vpack.c.b16 %v1107, %v1103
      %v1336 = vpack.c.b16 %v1112, %v1108
      %v1337 = vpack.c.b16 %v1113, %v1109
      %v1338 = vpack.c.b16 %v1114, %v1110
      %v1339 = vpack.c.b16 %v1115, %v1111
      %v1340 = vpack.c.b16 %v1120, %v1116
      %v1341 = vpack.c.b16 %v1121, %v1117
      %v1342 = vpack.c.b16 %v1122, %v1118
      %v1343 = vpack.c.b16 %v1123, %v1119
      %v1344 = vpack.c.b16 %v1128, %v1124
      %v1345 = vpack.c.b16 %v1129, %v1125
      %v1346 = vpack.c.b16 %v1130, %v1126
      %v1347 = vpack.c.b16 %v1131, %v1127
      %v1348 = vpack.c.b16 %v1136, %v1132
      %v1349 = vpack.c.b16 %v1137, %v1133
      %v1350 = vpack.c.b16 %v1138, %v1134
      %v1351 = vpack.c.b16 %v1139, %v1135
      %v1352 = vpack.c.b16 %v1144, %v1140
      %v1353 = vpack.c.b16 %v1145, %v1141
      %v1354 = vpack.c.b16 %v1146, %v1142
      %v1355 = vpack.c.b16 %v1147, %v1143
      %v1356 = vpack.c.b16 %v1152, %v1148
      %v1357 = vpack.c.b16 %v1153, %v1149
      %v1358 = vpack.c.b16 %v1154, %v1150
      %v1359 = vpack.c.b16 %v1155, %v1151
      %v1360 = vpack.c.b16 %v1160, %v1156
      %v1361 = vpack.c.b16 %v1161, %v1157
      %v1362 = vpack.c.b16 %v1162, %v1158
      %v1363 = vpack.c.b16 %v1163, %v1159
      %v1364 = vpack.c.b16 %v1168, %v1164
      %v1365 = vpack.c.b16 %v1169, %v1165
      %v1366 = vpack.c.b16 %v1170, %v1166
      %v1367 = vpack.c.b16 %v1171, %v1167
      %v1368 = vpack.c.b16 %v1176, %v1172
      %v1369 = vpack.c.b16 %v1177, %v1173
      %v1370 = vpack.c.b16 %v1178, %v1174
      %v1371 = vpack.c.b16 %v1179, %v1175
      %v1372 = vpack.c.b16 %v1184, %v1180
      %v1373 = vpack.c.b16 %v1185, %v1181
      %v1374 = vpack.c.b16 %v1186, %v1182
      %v1375 = vpack.c.b16 %v1187, %v1183
      %v1376 = vpack.c.b16 %v1192, %v1188
      %v1377 = vpack.c.b16 %v1193, %v1189
      %v1378 = vpack.c.b16 %v1194, %v1190
      %v1379 = vpack.c.b16 %v1195, %v1191
      %v1380 = vpack.c.b16 %v1200, %v1196
      %v1381 = vpack.c.b16 %v1201, %v1197
      %v1382 = vpack.c.b16 %v1202, %v1198
      %v1383 = vpack.c.b16 %v1203, %v1199
      %v1384 = vpack.c.b16 %v1208, %v1204
      %v1385 = vpack.c.b16 %v1209, %v1205
      %v1386 = vpack.c.b16 %v1210, %v1206
      %v1387 = vpack.c.b16 %v1211, %v1207
      %v1388 = vpack.c.b16 %v1216, %v1212
      %v1389 = vpack.c.b16 %v1217, %v1213
      %v1390 = vpack.c.b16 %v1218, %v1214
      %v1391 = vpack.c.b16 %v1219, %v1215
      %v1392 = vpack.c.b16 %v1224, %v1220
      %v1393 = vpack.c.b16 %v1225, %v1221
      %v1394 = vpack.c.b16 %v1226, %v1222
      %v1395 = vpack.c.b16 %v1227, %v1223
      %v1396 = vpack.c.b16 %v1232, %v1228
      %v1397 = vpack.c.b16 %v1233, %v1229
      %v1398 = vpack.c.b16 %v1234, %v1230
      %v1399 = vpack.c.b16 %v1235, %v1231
      %v1400 = vpack.c.b16 %v1240, %v1236
      %v1401 = vpack.c.b16 %v1241, %v1237
      %v1402 = vpack.c.b16 %v1242, %v1238
      %v1403 = vpack.c.b16 %v1243, %v1239
      %v1404 = vpack.c.b16 %v1248, %v1244
      %v1405 = vpack.c.b16 %v1249, %v1245
      %v1406 = vpack.c.b16 %v1250, %v1246
      %v1407 = vpack.c.b16 %v1251, %v1247
      %v1408 = vpack.c.b16 %v1256, %v1252
      %v1409 = vpack.c.b16 %v1257, %v1253
      %v1410 = vpack.c.b16 %v1258, %v1254
      %v1411 = vpack.c.b16 %v1259, %v1255
      %v1412 = vpack.c.b16 %v1264, %v1260
      %v1413 = vpack.c.b16 %v1265, %v1261
      %v1414 = vpack.c.b16 %v1266, %v1262
      %v1415 = vpack.c.b16 %v1267, %v1263
      %v1416 = vpack.c.b16 %v1272, %v1268
      %v1417 = vpack.c.b16 %v1273, %v1269
      %v1418 = vpack.c.b16 %v1274, %v1270
      %v1419 = vpack.c.b16 %v1275, %v1271
      %v1420 = vpack.c.b16 %v1280, %v1276
      %v1421 = vpack.c.b16 %v1281, %v1277
      %v1422 = vpack.c.b16 %v1282, %v1278
      %v1423 = vpack.c.b16 %v1283, %v1279
      %v1424 = vpack.c.b16 %v1288, %v1284
      %v1425 = vpack.c.b16 %v1289, %v1285
      %v1426 = vpack.c.b16 %v1290, %v1286
      %v1427 = vpack.c.b16 %v1291, %v1287
      %v1428 = vpack.c.b16 %v1296, %v1292
      %v1429 = vpack.c.b16 %v1297, %v1293
      %v1430 = vpack.c.b16 %v1298, %v1294
      %v1431 = vpack.c.b16 %v1299, %v1295
      %v1432 = vpack.c.b16 %v1304, %v1300
      %v1433 = vpack.c.b16 %v1305, %v1301
      %v1434 = vpack.c.b16 %v1306, %v1302
      %v1435 = vpack.c.b16 %v1307, %v1303
      %1564 = vmatprep.subr.bf16.mxu0 %v1309
      %1565 = vmatpush1.bf16.msra.mxu0 %v1308
      %1566 = vmatprep.subr.bf16.mxu0 %v1313
      %1567 = vmatpush1.bf16.msra.mxu0 %v1312
      %1568 = vmatprep.subr.bf16.mxu0 %v1317
      %1569 = vmatpush1.bf16.msra.mxu0 %v1316
      %1570 = vmatprep.subr.bf16.mxu0 %v1321
      %1571 = vmatpush1.bf16.msra.mxu0 %v1320
      %1572 = vmatprep.subr.bf16.mxu0 %v1325
      %1573 = vmatpush1.bf16.msra.mxu0 %v1324
      %1574 = vmatprep.subr.bf16.mxu0 %v1329
      %1575 = vmatpush1.bf16.msra.mxu0 %v1328
      %1576 = vmatprep.subr.bf16.mxu0 %v1333
      %1577 = vmatpush1.bf16.msra.mxu0 %v1332
      %1578 = vmatprep.subr.bf16.mxu0 %v1337
      %1579 = vmatpush1.bf16.msra.mxu0 %v1336
      %1580 = vmatprep.subr.bf16.mxu0 %v1341
      %1581 = vmatpush1.bf16.msra.mxu0 %v1340
      %1582 = vmatprep.subr.bf16.mxu0 %v1345
      %1583 = vmatpush1.bf16.msra.mxu0 %v1344
      %1584 = vmatprep.subr.bf16.mxu0 %v1349
      %1585 = vmatpush1.bf16.msra.mxu0 %v1348
      %1586 = vmatprep.subr.bf16.mxu0 %v1353
      %1587 = vmatpush1.bf16.msra.mxu0 %v1352
      %1588 = vmatprep.subr.bf16.mxu0 %v1357
      %1589 = vmatpush1.bf16.msra.mxu0 %v1356
      %1590 = vmatprep.subr.bf16.mxu0 %v1361
      %1591 = vmatpush1.bf16.msra.mxu0 %v1360
      %1592 = vmatprep.subr.bf16.mxu0 %v1365
      %1593 = vmatpush1.bf16.msra.mxu0 %v1364
      %1594 = vmatprep.subr.bf16.mxu0 %v1369
      %1595 = vmatpush1.bf16.msra.mxu0 %v1368
      %1596 = vmatprep.mubr.bf16.mxu0 %v917
      %1597 = vmatmul.mubr.bf16.gmra.mrb[0].mxu0 %v916
      %v1598 = vpop.f32.mrb[0].mxu0
      %v1599 = vadd.f32 %v800, %v1598
      %v1600 = vpop.f32.mrb[0].mxu0
      %v1601 = vadd.f32 %v804, %v1600
      %v1602 = vpop.f32.mrb[0].mxu0
      %v1603 = vpop.f32.mrb[0].mxu0
      %1604 = vdwg.mxu0
      %1605 = vmatprep.subr.bf16.mxu0 %v1373
      %1606 = vmatpush1.bf16.msra.mxu0 %v1372
      %1607 = vmatprep.subr.bf16.mxu0 %v1377
      %1608 = vmatpush1.bf16.msra.mxu0 %v1376
      %1609 = vmatprep.subr.bf16.mxu0 %v1381
      %1610 = vmatpush1.bf16.msra.mxu0 %v1380
      %1611 = vmatprep.subr.bf16.mxu0 %v1385
      %1612 = vmatpush1.bf16.msra.mxu0 %v1384
      %1613 = vmatprep.subr.bf16.mxu0 %v1389
      %1614 = vmatpush1.bf16.msra.mxu0 %v1388
      %1615 = vmatprep.subr.bf16.mxu0 %v1393
      %1616 = vmatpush1.bf16.msra.mxu0 %v1392
      %1617 = vmatprep.subr.bf16.mxu0 %v1397
      %1618 = vmatpush1.bf16.msra.mxu0 %v1396
      %1619 = vmatprep.subr.bf16.mxu0 %v1401
      %1620 = vmatpush1.bf16.msra.mxu0 %v1400
      %1621 = vmatprep.subr.bf16.mxu0 %v1405
      %1622 = vmatpush1.bf16.msra.mxu0 %v1404
      %1623 = vmatprep.subr.bf16.mxu0 %v1409
      %1624 = vmatpush1.bf16.msra.mxu0 %v1408
      %1625 = vmatprep.subr.bf16.mxu0 %v1413
      %1626 = vmatpush1.bf16.msra.mxu0 %v1412
      %1627 = vmatprep.subr.bf16.mxu0 %v1417
      %1628 = vmatpush1.bf16.msra.mxu0 %v1416
      %1629 = vmatprep.subr.bf16.mxu0 %v1421
      %1630 = vmatpush1.bf16.msra.mxu0 %v1420
      %1631 = vmatprep.subr.bf16.mxu0 %v1425
      %1632 = vmatpush1.bf16.msra.mxu0 %v1424
      %1633 = vmatprep.subr.bf16.mxu0 %v1429
      %1634 = vmatpush1.bf16.msra.mxu0 %v1428
      %1635 = vmatprep.subr.bf16.mxu0 %v1433
      %1636 = vmatpush1.bf16.msra.mxu0 %v1432
      %1637 = vmatprep.mubr.bf16.mxu0 %v919
      %1638 = vmatmul.mubr.bf16.gmra.mrb[0].mxu0 %v918
      %v1639 = vpop.f32.mrb[0].mxu0
      %v1640 = vadd.f32 %v1599, %v1639
      %v1641 = vpop.f32.mrb[0].mxu0
      %v1642 = vadd.f32 %v1601, %v1641
      %v1643 = vpop.f32.mrb[0].mxu0
      %v1644 = vpop.f32.mrb[0].mxu0
      %1645 = vdwg.mxu0
      %1646 = vmatprep.subr.bf16.mxu0 %v1311
      %1647 = vmatpush1.bf16.msra.mxu0 %v1310
      %1648 = vmatprep.subr.bf16.mxu0 %v1315
      %1649 = vmatpush1.bf16.msra.mxu0 %v1314
      %1650 = vmatprep.subr.bf16.mxu0 %v1319
      %1651 = vmatpush1.bf16.msra.mxu0 %v1318
      %1652 = vmatprep.subr.bf16.mxu0 %v1323
      %1653 = vmatpush1.bf16.msra.mxu0 %v1322
      %1654 = vmatprep.subr.bf16.mxu0 %v1327
      %1655 = vmatpush1.bf16.msra.mxu0 %v1326
      %1656 = vmatprep.subr.bf16.mxu0 %v1331
      %1657 = vmatpush1.bf16.msra.mxu0 %v1330
      %1658 = vmatprep.subr.bf16.mxu0 %v1335
      %1659 = vmatpush1.bf16.msra.mxu0 %v1334
      %1660 = vmatprep.subr.bf16.mxu0 %v1339
      %1661 = vmatpush1.bf16.msra.mxu0 %v1338
      %1662 = vmatprep.subr.bf16.mxu0 %v1343
      %1663 = vmatpush1.bf16.msra.mxu0 %v1342
      %1664 = vmatprep.subr.bf16.mxu0 %v1347
      %1665 = vmatpush1.bf16.msra.mxu0 %v1346
      %1666 = vmatprep.subr.bf16.mxu0 %v1351
      %1667 = vmatpush1.bf16.msra.mxu0 %v1350
      %1668 = vmatprep.subr.bf16.mxu0 %v1355
      %1669 = vmatpush1.bf16.msra.mxu0 %v1354
      %1670 = vmatprep.subr.bf16.mxu0 %v1359
      %1671 = vmatpush1.bf16.msra.mxu0 %v1358
      %1672 = vmatprep.subr.bf16.mxu0 %v1363
      %1673 = vmatpush1.bf16.msra.mxu0 %v1362
      %1674 = vmatprep.subr.bf16.mxu0 %v1367
      %1675 = vmatpush1.bf16.msra.mxu0 %v1366
      %1676 = vmatprep.subr.bf16.mxu0 %v1371
      %1677 = vmatpush1.bf16.msra.mxu0 %v1370
      %1678 = vmatprep.mubr.bf16.mxu0 %v917
      %1679 = vmatmul.mubr.bf16.gmra.mrb[0].mxu0 %v916
      %v1680 = vpop.f32.mrb[0].mxu0
      %v1681 = vadd.f32 %v808, %v1680
      %v1682 = vpop.f32.mrb[0].mxu0
      %v1683 = vadd.f32 %v812, %v1682
      %v1684 = vpop.f32.mrb[0].mxu0
      %v1685 = vpop.f32.mrb[0].mxu0
      %1686 = vdwg.mxu0
      %1687 = vmatprep.subr.bf16.mxu0 %v1375
      %1688 = vmatpush1.bf16.msra.mxu0 %v1374
      %1689 = vmatprep.subr.bf16.mxu0 %v1379
      %1690 = vmatpush1.bf16.msra.mxu0 %v1378
      %1691 = vmatprep.subr.bf16.mxu0 %v1383
      %1692 = vmatpush1.bf16.msra.mxu0 %v1382
      %1693 = vmatprep.subr.bf16.mxu0 %v1387
      %1694 = vmatpush1.bf16.msra.mxu0 %v1386
      %1695 = vmatprep.subr.bf16.mxu0 %v1391
      %1696 = vmatpush1.bf16.msra.mxu0 %v1390
      %1697 = vmatprep.subr.bf16.mxu0 %v1395
      %1698 = vmatpush1.bf16.msra.mxu0 %v1394
      %1699 = vmatprep.subr.bf16.mxu0 %v1399
      %1700 = vmatpush1.bf16.msra.mxu0 %v1398
      %1701 = vmatprep.subr.bf16.mxu0 %v1403
      %1702 = vmatpush1.bf16.msra.mxu0 %v1402
      %1703 = vmatprep.subr.bf16.mxu0 %v1407
      %1704 = vmatpush1.bf16.msra.mxu0 %v1406
      %1705 = vmatprep.subr.bf16.mxu0 %v1411
      %1706 = vmatpush1.bf16.msra.mxu0 %v1410
      %1707 = vmatprep.subr.bf16.mxu0 %v1415
      %1708 = vmatpush1.bf16.msra.mxu0 %v1414
      %1709 = vmatprep.subr.bf16.mxu0 %v1419
      %1710 = vmatpush1.bf16.msra.mxu0 %v1418
      %1711 = vmatprep.subr.bf16.mxu0 %v1423
      %1712 = vmatpush1.bf16.msra.mxu0 %v1422
      %1713 = vmatprep.subr.bf16.mxu0 %v1427
      %1714 = vmatpush1.bf16.msra.mxu0 %v1426
      %1715 = vmatprep.subr.bf16.mxu0 %v1431
      %1716 = vmatpush1.bf16.msra.mxu0 %v1430
      %1717 = vmatprep.subr.bf16.mxu0 %v1435
      %1718 = vmatpush1.bf16.msra.mxu0 %v1434
      %1719 = vmatprep.mubr.bf16.mxu0 %v919
      %1720 = vmatmul.mubr.bf16.gmra.mrb[0].mxu0 %v918
      %v1721 = vpop.f32.mrb[0].mxu0
      %v1722 = vadd.f32 %v1681, %v1721
      %v1723 = vpop.f32.mrb[0].mxu0
      %v1724 = vadd.f32 %v1683, %v1723
      %v1725 = vpop.f32.mrb[0].mxu0
      %v1726 = vpop.f32.mrb[0].mxu0
      %1727 = vdwg.mxu0
      %v1728 = vmax.f32 %v1640, 0.0
      %v1729 = vmax.f32 %v1642, 0.0
      %v1730 = vmax.f32 %v1722, 0.0
      %v1731 = vmax.f32 %v1724, 0.0
      %v1732 = vpack.c.bf16 %v1728, %v1728
      %v1733 = vpack.c.bf16 %v1729, %v1729
      %v1734 = vpack.c.bf16 %v1730, %v1730
      %v1735 = vpack.c.bf16 %v1731, %v1731
      %v1736 = vld [vmem:[%s3] sm:$0xff]
      %v1737 = vld [vmem:[%s3 + $0x8] sm:$0xff]
      %v1738 = vld [vmem:[%s3 + $0x10] sm:$0xff]
      %v1739 = vld [vmem:[%s3 + $0x18] sm:$0xff]
      %v1740 = vld [vmem:[%s3 + $0x20] sm:$0xff]
      %v1741 = vld [vmem:[%s3 + $0x28] sm:$0xff]
      %v1742 = vld [vmem:[%s3 + $0x30] sm:$0xff]
      %v1743 = vld [vmem:[%s3 + $0x38] sm:$0xff]
      %v1744 = vld [vmem:[%s3 + $0x40] sm:$0xff]
      %v1745 = vld [vmem:[%s3 + $0x48] sm:$0xff]
      %v1746 = vld [vmem:[%s3 + $0x50] sm:$0xff]
      %v1747 = vld [vmem:[%s3 + $0x58] sm:$0xff]
      %v1748 = vld [vmem:[%s3 + $0x60] sm:$0xff]
      %v1749 = vld [vmem:[%s3 + $0x68] sm:$0xff]
      %v1750 = vld [vmem:[%s3 + $0x70] sm:$0xff]
      %v1751 = vld [vmem:[%s3 + $0x78] sm:$0xff]
      %v1752 = vld [vmem:[%s3 + $0x80] sm:$0xff]
      %v1753 = vld [vmem:[%s3 + $0x88] sm:$0xff]
      %v1754 = vld [vmem:[%s3 + $0x90] sm:$0xff]
      %v1755 = vld [vmem:[%s3 + $0x98] sm:$0xff]
      %v1756 = vld [vmem:[%s3 + $0xa0] sm:$0xff]
      %v1757 = vld [vmem:[%s3 + $0xa8] sm:$0xff]
      %v1758 = vld [vmem:[%s3 + $0xb0] sm:$0xff]
      %v1759 = vld [vmem:[%s3 + $0xb8] sm:$0xff]
      %v1760 = vld [vmem:[%s3 + $0xc0] sm:$0xff]
      %v1761 = vld [vmem:[%s3 + $0xc8] sm:$0xff]
      %v1762 = vld [vmem:[%s3 + $0xd0] sm:$0xff]
      %v1763 = vld [vmem:[%s3 + $0xd8] sm:$0xff]
      %v1764 = vld [vmem:[%s3 + $0xe0] sm:$0xff]
      %v1765 = vld [vmem:[%s3 + $0xe8] sm:$0xff]
      %v1766 = vld [vmem:[%s3 + $0xf0] sm:$0xff]
      %v1767 = vld [vmem:[%s3 + $0xf8] sm:$0xff]
      %v1768 = vld [vmem:[%s3 + $0x100] sm:$0xff]
      %v1769 = vld [vmem:[%s3 + $0x108] sm:$0xff]
      %v1770 = vld [vmem:[%s3 + $0x110] sm:$0xff]
      %v1771 = vld [vmem:[%s3 + $0x118] sm:$0xff]
      %v1772 = vld [vmem:[%s3 + $0x120] sm:$0xff]
      %v1773 = vld [vmem:[%s3 + $0x128] sm:$0xff]
      %v1774 = vld [vmem:[%s3 + $0x130] sm:$0xff]
      %v1775 = vld [vmem:[%s3 + $0x138] sm:$0xff]
      %v1776 = vld [vmem:[%s3 + $0x140] sm:$0xff]
      %v1777 = vld [vmem:[%s3 + $0x148] sm:$0xff]
      %v1778 = vld [vmem:[%s3 + $0x150] sm:$0xff]
      %v1779 = vld [vmem:[%s3 + $0x158] sm:$0xff]
      %v1780 = vld [vmem:[%s3 + $0x160] sm:$0xff]
      %v1781 = vld [vmem:[%s3 + $0x168] sm:$0xff]
      %v1782 = vld [vmem:[%s3 + $0x170] sm:$0xff]
      %v1783 = vld [vmem:[%s3 + $0x178] sm:$0xff]
      %v1784 = vld [vmem:[%s3 + $0x180] sm:$0xff]
      %v1785 = vld [vmem:[%s3 + $0x188] sm:$0xff]
      %v1786 = vld [vmem:[%s3 + $0x190] sm:$0xff]
      %v1787 = vld [vmem:[%s3 + $0x198] sm:$0xff]
      %v1788 = vld [vmem:[%s3 + $0x1a0] sm:$0xff]
      %v1789 = vld [vmem:[%s3 + $0x1a8] sm:$0xff]
      %v1790 = vld [vmem:[%s3 + $0x1b0] sm:$0xff]
      %v1791 = vld [vmem:[%s3 + $0x1b8] sm:$0xff]
      %v1792 = vld [vmem:[%s3 + $0x1c0] sm:$0xff]
      %v1793 = vld [vmem:[%s3 + $0x1c8] sm:$0xff]
      %v1794 = vld [vmem:[%s3 + $0x1d0] sm:$0xff]
      %v1795 = vld [vmem:[%s3 + $0x1d8] sm:$0xff]
      %v1796 = vld [vmem:[%s3 + $0x1e0] sm:$0xff]
      %v1797 = vld [vmem:[%s3 + $0x1e8] sm:$0xff]
      %v1798 = vld [vmem:[%s3 + $0x1f0] sm:$0xff]
      %v1799 = vld [vmem:[%s3 + $0x1f8] sm:$0xff]
      %v1800 = vld [vmem:[%s4] sm:$0x3]
      %v1802 = vlaneseq
      %v1803 = vshrl.u32 %v1802, 7
      %v1804 = vsub.s32 0, %v1803
      %v1805 = vrot.slane %v1800, %v1804
      %v1806 = vlaneseq
      %v1807 = vshrl.u32 %v1806, 7
      %v1808 = vsub.s32 1, %v1807
      %v1809 = vrot.slane %v1800, %v1808
      %v1876 = vunpack.c.l.b16 %v1736
      %v1877 = vunpack.c.h.b16 %v1736
      %v1878 = vunpack.c.l.b16 %v1737
      %v1879 = vunpack.c.h.b16 %v1737
      %v1880 = vunpack.c.l.b16 %v1738
      %v1881 = vunpack.c.h.b16 %v1738
      %v1882 = vunpack.c.l.b16 %v1739
      %v1883 = vunpack.c.h.b16 %v1739
      %v1884 = vunpack.c.l.b16 %v1740
      %v1885 = vunpack.c.h.b16 %v1740
      %v1886 = vunpack.c.l.b16 %v1741
      %v1887 = vunpack.c.h.b16 %v1741
      %v1888 = vunpack.c.l.b16 %v1742
      %v1889 = vunpack.c.h.b16 %v1742
      %v1890 = vunpack.c.l.b16 %v1743
      %v1891 = vunpack.c.h.b16 %v1743
      %v1892 = vunpack.c.l.b16 %v1744
      %v1893 = vunpack.c.h.b16 %v1744
      %v1894 = vunpack.c.l.b16 %v1745
      %v1895 = vunpack.c.h.b16 %v1745
      %v1896 = vunpack.c.l.b16 %v1746
      %v1897 = vunpack.c.h.b16 %v1746
      %v1898 = vunpack.c.l.b16 %v1747
      %v1899 = vunpack.c.h.b16 %v1747
      %v1900 = vunpack.c.l.b16 %v1748
      %v1901 = vunpack.c.h.b16 %v1748
      %v1902 = vunpack.c.l.b16 %v1749
      %v1903 = vunpack.c.h.b16 %v1749
      %v1904 = vunpack.c.l.b16 %v1750
      %v1905 = vunpack.c.h.b16 %v1750
      %v1906 = vunpack.c.l.b16 %v1751
      %v1907 = vunpack.c.h.b16 %v1751
      %v1908 = vunpack.c.l.b16 %v1752
      %v1909 = vunpack.c.h.b16 %v1752
      %v1910 = vunpack.c.l.b16 %v1753
      %v1911 = vunpack.c.h.b16 %v1753
      %v1912 = vunpack.c.l.b16 %v1754
      %v1913 = vunpack.c.h.b16 %v1754
      %v1914 = vunpack.c.l.b16 %v1755
      %v1915 = vunpack.c.h.b16 %v1755
      %v1916 = vunpack.c.l.b16 %v1756
      %v1917 = vunpack.c.h.b16 %v1756
      %v1918 = vunpack.c.l.b16 %v1757
      %v1919 = vunpack.c.h.b16 %v1757
      %v1920 = vunpack.c.l.b16 %v1758
      %v1921 = vunpack.c.h.b16 %v1758
      %v1922 = vunpack.c.l.b16 %v1759
      %v1923 = vunpack.c.h.b16 %v1759
      %v1924 = vunpack.c.l.b16 %v1760
      %v1925 = vunpack.c.h.b16 %v1760
      %v1926 = vunpack.c.l.b16 %v1761
      %v1927 = vunpack.c.h.b16 %v1761
      %v1928 = vunpack.c.l.b16 %v1762
      %v1929 = vunpack.c.h.b16 %v1762
      %v1930 = vunpack.c.l.b16 %v1763
      %v1931 = vunpack.c.h.b16 %v1763
      %v1932 = vunpack.c.l.b16 %v1764
      %v1933 = vunpack.c.h.b16 %v1764
      %v1934 = vunpack.c.l.b16 %v1765
      %v1935 = vunpack.c.h.b16 %v1765
      %v1936 = vunpack.c.l.b16 %v1766
      %v1937 = vunpack.c.h.b16 %v1766
      %v1938 = vunpack.c.l.b16 %v1767
      %v1939 = vunpack.c.h.b16 %v1767
      %v1940 = vunpack.c.l.b16 %v1768
      %v1941 = vunpack.c.h.b16 %v1768
      %v1942 = vunpack.c.l.b16 %v1769
      %v1943 = vunpack.c.h.b16 %v1769
      %v1944 = vunpack.c.l.b16 %v1770
      %v1945 = vunpack.c.h.b16 %v1770
      %v1946 = vunpack.c.l.b16 %v1771
      %v1947 = vunpack.c.h.b16 %v1771
      %v1948 = vunpack.c.l.b16 %v1772
      %v1949 = vunpack.c.h.b16 %v1772
      %v1950 = vunpack.c.l.b16 %v1773
      %v1951 = vunpack.c.h.b16 %v1773
      %v1952 = vunpack.c.l.b16 %v1774
      %v1953 = vunpack.c.h.b16 %v1774
      %v1954 = vunpack.c.l.b16 %v1775
      %v1955 = vunpack.c.h.b16 %v1775
      %v1956 = vunpack.c.l.b16 %v1776
      %v1957 = vunpack.c.h.b16 %v1776
      %v1958 = vunpack.c.l.b16 %v1777
      %v1959 = vunpack.c.h.b16 %v1777
      %v1960 = vunpack.c.l.b16 %v1778
      %v1961 = vunpack.c.h.b16 %v1778
      %v1962 = vunpack.c.l.b16 %v1779
      %v1963 = vunpack.c.h.b16 %v1779
      %v1964 = vunpack.c.l.b16 %v1780
      %v1965 = vunpack.c.h.b16 %v1780
      %v1966 = vunpack.c.l.b16 %v1781
      %v1967 = vunpack.c.h.b16 %v1781
      %v1968 = vunpack.c.l.b16 %v1782
      %v1969 = vunpack.c.h.b16 %v1782
      %v1970 = vunpack.c.l.b16 %v1783
      %v1971 = vunpack.c.h.b16 %v1783
      %v1972 = vunpack.c.l.b16 %v1784
      %v1973 = vunpack.c.h.b16 %v1784
      %v1974 = vunpack.c.l.b16 %v1785
      %v1975 = vunpack.c.h.b16 %v1785
      %v1976 = vunpack.c.l.b16 %v1786
      %v1977 = vunpack.c.h.b16 %v1786
      %v1978 = vunpack.c.l.b16 %v1787
      %v1979 = vunpack.c.h.b16 %v1787
      %v1980 = vunpack.c.l.b16 %v1788
      %v1981 = vunpack.c.h.b16 %v1788
      %v1982 = vunpack.c.l.b16 %v1789
      %v1983 = vunpack.c.h.b16 %v1789
      %v1984 = vunpack.c.l.b16 %v1790
      %v1985 = vunpack.c.h.b16 %v1790
      %v1986 = vunpack.c.l.b16 %v1791
      %v1987 = vunpack.c.h.b16 %v1791
      %v1988 = vunpack.c.l.b16 %v1792
      %v1989 = vunpack.c.h.b16 %v1792
      %v1990 = vunpack.c.l.b16 %v1793
      %v1991 = vunpack.c.h.b16 %v1793
      %v1992 = vunpack.c.l.b16 %v1794
      %v1993 = vunpack.c.h.b16 %v1794
      %v1994 = vunpack.c.l.b16 %v1795
      %v1995 = vunpack.c.h.b16 %v1795
      %v1996 = vunpack.c.l.b16 %v1796
      %v1997 = vunpack.c.h.b16 %v1796
      %v1998 = vunpack.c.l.b16 %v1797
      %v1999 = vunpack.c.h.b16 %v1797
      %v2000 = vunpack.c.l.b16 %v1798
      %v2001 = vunpack.c.h.b16 %v1798
      %v2002 = vunpack.c.l.b16 %v1799
      %v2003 = vunpack.c.h.b16 %v1799
      %v2004 = vpack.c.b16 %v1878, %v1876
      %v2005 = vpack.c.b16 %v1879, %v1877
      %v2006 = vpack.c.b16 %v1882, %v1880
      %v2007 = vpack.c.b16 %v1883, %v1881
      %v2008 = vpack.c.b16 %v1886, %v1884
      %v2009 = vpack.c.b16 %v1887, %v1885
      %v2010 = vpack.c.b16 %v1890, %v1888
      %v2011 = vpack.c.b16 %v1891, %v1889
      %v2012 = vpack.c.b16 %v1894, %v1892
      %v2013 = vpack.c.b16 %v1895, %v1893
      %v2014 = vpack.c.b16 %v1898, %v1896
      %v2015 = vpack.c.b16 %v1899, %v1897
      %v2016 = vpack.c.b16 %v1902, %v1900
      %v2017 = vpack.c.b16 %v1903, %v1901
      %v2018 = vpack.c.b16 %v1906, %v1904
      %v2019 = vpack.c.b16 %v1907, %v1905
      %v2020 = vpack.c.b16 %v1910, %v1908
      %v2021 = vpack.c.b16 %v1911, %v1909
      %v2022 = vpack.c.b16 %v1914, %v1912
      %v2023 = vpack.c.b16 %v1915, %v1913
      %v2024 = vpack.c.b16 %v1918, %v1916
      %v2025 = vpack.c.b16 %v1919, %v1917
      %v2026 = vpack.c.b16 %v1922, %v1920
      %v2027 = vpack.c.b16 %v1923, %v1921
      %v2028 = vpack.c.b16 %v1926, %v1924
      %v2029 = vpack.c.b16 %v1927, %v1925
      %v2030 = vpack.c.b16 %v1930, %v1928
      %v2031 = vpack.c.b16 %v1931, %v1929
      %v2032 = vpack.c.b16 %v1934, %v1932
      %v2033 = vpack.c.b16 %v1935, %v1933
      %v2034 = vpack.c.b16 %v1938, %v1936
      %v2035 = vpack.c.b16 %v1939, %v1937
      %v2036 = vpack.c.b16 %v1942, %v1940
      %v2037 = vpack.c.b16 %v1943, %v1941
      %v2038 = vpack.c.b16 %v1946, %v1944
      %v2039 = vpack.c.b16 %v1947, %v1945
      %v2040 = vpack.c.b16 %v1950, %v1948
      %v2041 = vpack.c.b16 %v1951, %v1949
      %v2042 = vpack.c.b16 %v1954, %v1952
      %v2043 = vpack.c.b16 %v1955, %v1953
      %v2044 = vpack.c.b16 %v1958, %v1956
      %v2045 = vpack.c.b16 %v1959, %v1957
      %v2046 = vpack.c.b16 %v1962, %v1960
      %v2047 = vpack.c.b16 %v1963, %v1961
      %v2048 = vpack.c.b16 %v1966, %v1964
      %v2049 = vpack.c.b16 %v1967, %v1965
      %v2050 = vpack.c.b16 %v1970, %v1968
      %v2051 = vpack.c.b16 %v1971, %v1969
      %v2052 = vpack.c.b16 %v1974, %v1972
      %v2053 = vpack.c.b16 %v1975, %v1973
      %v2054 = vpack.c.b16 %v1978, %v1976
      %v2055 = vpack.c.b16 %v1979, %v1977
      %v2056 = vpack.c.b16 %v1982, %v1980
      %v2057 = vpack.c.b16 %v1983, %v1981
      %v2058 = vpack.c.b16 %v1986, %v1984
      %v2059 = vpack.c.b16 %v1987, %v1985
      %v2060 = vpack.c.b16 %v1990, %v1988
      %v2061 = vpack.c.b16 %v1991, %v1989
      %v2062 = vpack.c.b16 %v1994, %v1992
      %v2063 = vpack.c.b16 %v1995, %v1993
      %v2064 = vpack.c.b16 %v1998, %v1996
      %v2065 = vpack.c.b16 %v1999, %v1997
      %v2066 = vpack.c.b16 %v2002, %v2000
      %v2067 = vpack.c.b16 %v2003, %v2001
      %2132 = vmatprep.subr.bf16.mxu0 %v2005
      %2133 = vmatpush1.bf16.msra.mxu0 %v2004
      %2134 = vmatprep.subr.bf16.mxu0 %v2007
      %2135 = vmatpush1.bf16.msra.mxu0 %v2006
      %2136 = vmatprep.subr.bf16.mxu0 %v2009
      %2137 = vmatpush1.bf16.msra.mxu0 %v2008
      %2138 = vmatprep.subr.bf16.mxu0 %v2011
      %2139 = vmatpush1.bf16.msra.mxu0 %v2010
      %2140 = vmatprep.subr.bf16.mxu0 %v2013
      %2141 = vmatpush1.bf16.msra.mxu0 %v2012
      %2142 = vmatprep.subr.bf16.mxu0 %v2015
      %2143 = vmatpush1.bf16.msra.mxu0 %v2014
      %2144 = vmatprep.subr.bf16.mxu0 %v2017
      %2145 = vmatpush1.bf16.msra.mxu0 %v2016
      %2146 = vmatprep.subr.bf16.mxu0 %v2019
      %2147 = vmatpush1.bf16.msra.mxu0 %v2018
      %2148 = vmatprep.subr.bf16.mxu0 %v2021
      %2149 = vmatpush1.bf16.msra.mxu0 %v2020
      %2150 = vmatprep.subr.bf16.mxu0 %v2023
      %2151 = vmatpush1.bf16.msra.mxu0 %v2022
      %2152 = vmatprep.subr.bf16.mxu0 %v2025
      %2153 = vmatpush1.bf16.msra.mxu0 %v2024
      %2154 = vmatprep.subr.bf16.mxu0 %v2027
      %2155 = vmatpush1.bf16.msra.mxu0 %v2026
      %2156 = vmatprep.subr.bf16.mxu0 %v2029
      %2157 = vmatpush1.bf16.msra.mxu0 %v2028
      %2158 = vmatprep.subr.bf16.mxu0 %v2031
      %2159 = vmatpush1.bf16.msra.mxu0 %v2030
      %2160 = vmatprep.subr.bf16.mxu0 %v2033
      %2161 = vmatpush1.bf16.msra.mxu0 %v2032
      %2162 = vmatprep.subr.bf16.mxu0 %v2035
      %2163 = vmatpush1.bf16.msra.mxu0 %v2034
      %2164 = vmatprep.mubr.bf16.mxu0 %v1733
      %2165 = vmatmul.mubr.bf16.gmra.mrb[0].mxu0 %v1732
      %v2166 = vpop.f32.mrb[0].mxu0
      %v2167 = vadd.f32 %v1805, %v2166
      %v2168 = vpop.f32.mrb[0].mxu0
      %v2169 = vadd.f32 %v1809, %v2168
      %v2170 = vpop.f32.mrb[0].mxu0
      %v2171 = vpop.f32.mrb[0].mxu0
      %2172 = vdwg.mxu0
      %2173 = vmatprep.subr.bf16.mxu0 %v2037
      %2174 = vmatpush1.bf16.msra.mxu0 %v2036
      %2175 = vmatprep.subr.bf16.mxu0 %v2039
      %2176 = vmatpush1.bf16.msra.mxu0 %v2038
      %2177 = vmatprep.subr.bf16.mxu0 %v2041
      %2178 = vmatpush1.bf16.msra.mxu0 %v2040
      %2179 = vmatprep.subr.bf16.mxu0 %v2043
      %2180 = vmatpush1.bf16.msra.mxu0 %v2042
      %2181 = vmatprep.subr.bf16.mxu0 %v2045
      %2182 = vmatpush1.bf16.msra.mxu0 %v2044
      %2183 = vmatprep.subr.bf16.mxu0 %v2047
      %2184 = vmatpush1.bf16.msra.mxu0 %v2046
      %2185 = vmatprep.subr.bf16.mxu0 %v2049
      %2186 = vmatpush1.bf16.msra.mxu0 %v2048
      %2187 = vmatprep.subr.bf16.mxu0 %v2051
      %2188 = vmatpush1.bf16.msra.mxu0 %v2050
      %2189 = vmatprep.subr.bf16.mxu0 %v2053
      %2190 = vmatpush1.bf16.msra.mxu0 %v2052
      %2191 = vmatprep.subr.bf16.mxu0 %v2055
      %2192 = vmatpush1.bf16.msra.mxu0 %v2054
      %2193 = vmatprep.subr.bf16.mxu0 %v2057
      %2194 = vmatpush1.bf16.msra.mxu0 %v2056
      %2195 = vmatprep.subr.bf16.mxu0 %v2059
      %2196 = vmatpush1.bf16.msra.mxu0 %v2058
      %2197 = vmatprep.subr.bf16.mxu0 %v2061
      %2198 = vmatpush1.bf16.msra.mxu0 %v2060
      %2199 = vmatprep.subr.bf16.mxu0 %v2063
      %2200 = vmatpush1.bf16.msra.mxu0 %v2062
      %2201 = vmatprep.subr.bf16.mxu0 %v2065
      %2202 = vmatpush1.bf16.msra.mxu0 %v2064
      %2203 = vmatprep.subr.bf16.mxu0 %v2067
      %2204 = vmatpush1.bf16.msra.mxu0 %v2066
      %2205 = vmatprep.mubr.bf16.mxu0 %v1735
      %2206 = vmatmul.mubr.bf16.gmra.mrb[0].mxu0 %v1734
      %v2207 = vpop.f32.mrb[0].mxu0
      %v2208 = vadd.f32 %v2167, %v2207
      %v2209 = vpop.f32.mrb[0].mxu0
      %v2210 = vadd.f32 %v2169, %v2209
      %v2211 = vpop.f32.mrb[0].mxu0
      %v2212 = vpop.f32.mrb[0].mxu0
      %2213 = vdwg.mxu0
      %v2214 = vmax.f32 %v2208, 0.0
      %v2215 = vmax.f32 %v2210, 0.0
      %v2216 = vpack.c.bf16 %v2214, %v2214
      %v2217 = vpack.c.bf16 %v2215, %v2215
      %v2218 = vld [vmem:[%s5] sm:$0xf]
      %v2219 = vld [vmem:[%s5 + $0x4] sm:$0xf]
      %v2220 = vld [vmem:[%s5 + $0x8] sm:$0xf]
      %v2221 = vld [vmem:[%s5 + $0xc] sm:$0xf]
      %v2222 = vld [vmem:[%s5 + $0x10] sm:$0xf]
      %v2223 = vld [vmem:[%s5 + $0x14] sm:$0xf]
      %v2224 = vld [vmem:[%s5 + $0x18] sm:$0xf]
      %v2225 = vld [vmem:[%s5 + $0x1c] sm:$0xf]
      %v2226 = vld [vmem:[%s5 + $0x20] sm:$0xf]
      %v2227 = vld [vmem:[%s5 + $0x24] sm:$0xf]
      %v2228 = vld [vmem:[%s5 + $0x28] sm:$0xf]
      %v2229 = vld [vmem:[%s5 + $0x2c] sm:$0xf]
      %v2230 = vld [vmem:[%s5 + $0x30] sm:$0xf]
      %v2231 = vld [vmem:[%s5 + $0x34] sm:$0xf]
      %v2232 = vld [vmem:[%s5 + $0x38] sm:$0xf]
      %v2233 = vld [vmem:[%s5 + $0x3c] sm:$0xf]
      %v2234 = vld [vmem:[%s5 + $0x40] sm:$0xf]
      %v2235 = vld [vmem:[%s5 + $0x44] sm:$0xf]
      %v2236 = vld [vmem:[%s5 + $0x48] sm:$0xf]
      %v2237 = vld [vmem:[%s5 + $0x4c] sm:$0xf]
      %v2238 = vld [vmem:[%s5 + $0x50] sm:$0xf]
      %v2239 = vld [vmem:[%s5 + $0x54] sm:$0xf]
      %v2240 = vld [vmem:[%s5 + $0x58] sm:$0xf]
      %v2241 = vld [vmem:[%s5 + $0x5c] sm:$0xf]
      %v2242 = vld [vmem:[%s5 + $0x60] sm:$0xf]
      %v2243 = vld [vmem:[%s5 + $0x64] sm:$0xf]
      %v2244 = vld [vmem:[%s5 + $0x68] sm:$0xf]
      %v2245 = vld [vmem:[%s5 + $0x6c] sm:$0xf]
      %v2246 = vld [vmem:[%s5 + $0x70] sm:$0xf]
      %v2247 = vld [vmem:[%s5 + $0x74] sm:$0xf]
      %v2248 = vld [vmem:[%s5 + $0x78] sm:$0xf]
      %v2249 = vld [vmem:[%s5 + $0x7c] sm:$0xf]
      %v2250 = vld [vmem:[%s6] sm:$0x1]
      %v2252 = vlaneseq
      %v2253 = vshrl.u32 %v2252, 7
      %v2254 = vsub.s32 0, %v2253
      %v2255 = vrot.slane %v2250, %v2254
      %v2289 = vunpack.c.l.b16 %v2218
      %v2290 = vunpack.c.l.b16 %v2219
      %v2291 = vunpack.c.l.b16 %v2220
      %v2292 = vunpack.c.l.b16 %v2221
      %v2293 = vunpack.c.l.b16 %v2222
      %v2294 = vunpack.c.l.b16 %v2223
      %v2295 = vunpack.c.l.b16 %v2224
      %v2296 = vunpack.c.l.b16 %v2225
      %v2297 = vunpack.c.l.b16 %v2226
      %v2298 = vunpack.c.l.b16 %v2227
      %v2299 = vunpack.c.l.b16 %v2228
      %v2300 = vunpack.c.l.b16 %v2229
      %v2301 = vunpack.c.l.b16 %v2230
      %v2302 = vunpack.c.l.b16 %v2231
      %v2303 = vunpack.c.l.b16 %v2232
      %v2304 = vunpack.c.l.b16 %v2233
      %v2305 = vunpack.c.l.b16 %v2234
      %v2306 = vunpack.c.l.b16 %v2235
      %v2307 = vunpack.c.l.b16 %v2236
      %v2308 = vunpack.c.l.b16 %v2237
      %v2309 = vunpack.c.l.b16 %v2238
      %v2310 = vunpack.c.l.b16 %v2239
      %v2311 = vunpack.c.l.b16 %v2240
      %v2312 = vunpack.c.l.b16 %v2241
      %v2313 = vunpack.c.l.b16 %v2242
      %v2314 = vunpack.c.l.b16 %v2243
      %v2315 = vunpack.c.l.b16 %v2244
      %v2316 = vunpack.c.l.b16 %v2245
      %v2317 = vunpack.c.l.b16 %v2246
      %v2318 = vunpack.c.l.b16 %v2247
      %v2319 = vunpack.c.l.b16 %v2248
      %v2320 = vunpack.c.l.b16 %v2249
      %v2321 = vpack.c.b16 %v2290, %v2289
      %v2322 = vpack.c.b16 %v2292, %v2291
      %v2323 = vpack.c.b16 %v2294, %v2293
      %v2324 = vpack.c.b16 %v2296, %v2295
      %v2325 = vpack.c.b16 %v2298, %v2297
      %v2326 = vpack.c.b16 %v2300, %v2299
      %v2327 = vpack.c.b16 %v2302, %v2301
      %v2328 = vpack.c.b16 %v2304, %v2303
      %v2329 = vpack.c.b16 %v2306, %v2305
      %v2330 = vpack.c.b16 %v2308, %v2307
      %v2331 = vpack.c.b16 %v2310, %v2309
      %v2332 = vpack.c.b16 %v2312, %v2311
      %v2333 = vpack.c.b16 %v2314, %v2313
      %v2334 = vpack.c.b16 %v2316, %v2315
      %v2335 = vpack.c.b16 %v2318, %v2317
      %v2336 = vpack.c.b16 %v2320, %v2319
      %2353 = vmatprep.subr.bf16.mxu0 0
      %2354 = vmatpush1.bf16.msra.mxu0 %v2321
      %2355 = vmatprep.subr.bf16.mxu0 0
      %2356 = vmatpush1.bf16.msra.mxu0 %v2322
      %2357 = vmatprep.subr.bf16.mxu0 0
      %2358 = vmatpush1.bf16.msra.mxu0 %v2323
      %2359 = vmatprep.subr.bf16.mxu0 0
      %2360 = vmatpush1.bf16.msra.mxu0 %v2324
      %2361 = vmatprep.subr.bf16.mxu0 0
      %2362 = vmatpush1.bf16.msra.mxu0 %v2325
      %2363 = vmatprep.subr.bf16.mxu0 0
      %2364 = vmatpush1.bf16.msra.mxu0 %v2326
      %2365 = vmatprep.subr.bf16.mxu0 0
      %2366 = vmatpush1.bf16.msra.mxu0 %v2327
      %2367 = vmatprep.subr.bf16.mxu0 0
      %2368 = vmatpush1.bf16.msra.mxu0 %v2328
      %2369 = vmatprep.subr.bf16.mxu0 0
      %2370 = vmatpush1.bf16.msra.mxu0 %v2329
      %2371 = vmatprep.subr.bf16.mxu0 0
      %2372 = vmatpush1.bf16.msra.mxu0 %v2330
      %2373 = vmatprep.subr.bf16.mxu0 0
      %2374 = vmatpush1.bf16.msra.mxu0 %v2331
      %2375 = vmatprep.subr.bf16.mxu0 0
      %2376 = vmatpush1.bf16.msra.mxu0 %v2332
      %2377 = vmatprep.subr.bf16.mxu0 0
      %2378 = vmatpush1.bf16.msra.mxu0 %v2333
      %2379 = vmatprep.subr.bf16.mxu0 0
      %2380 = vmatpush1.bf16.msra.mxu0 %v2334
      %2381 = vmatprep.subr.bf16.mxu0 0
      %2382 = vmatpush1.bf16.msra.mxu0 %v2335
      %2383 = vmatprep.subr.bf16.mxu0 0
      %2384 = vmatpush1.bf16.msra.mxu0 %v2336
      %2385 = vmatprep.mubr.bf16.mxu0 %v2217
      %2386 = vmatmul.mubr.bf16.gmra.mrb[0].mxu0 %v2216
      %v2387 = vpop.f32.mrb[0].mxu0
      %v2388 = vadd.f32 %v2255, %v2387
      %v2389 = vpop.f32.mrb[0].mxu0
      %v2390 = vpop.f32.mrb[0].mxu0
      %v2391 = vpop.f32.mrb[0].mxu0
      %2392 = vdwg.mxu0
      %v2393 = vlaneseq
      %v2394 = vand.u32 %v2393, 127
      %vm2395 = vcmp.eq.s32.totalorder %v2394, 0
      %v2396 = vxor.u32 %v2388, 2147483648
      %v2397 = vmul.f32 %v2396, 1.442695
      %v2398 = vpow.pop %v2397
      %v2399 = vadd.f32 %v2398, 1.0
      %v2400 = vrcp.pop %v2399
      %v2401 = vmul.f32 1.0, %v2400
      %v2402 = vsel %vm2395, %v2401, %v2388
      %vm2403 = vcmask 15360
      %2404 = vst.msk [vmem:[%s281] sm:$0xff] %vm2403, %v2402
      %p2405 = scmp.lt.s32.totalorder %s18, 1
      %s2406 = scalar_select %p2405, %s18, 1
      %s2407 = smul.addr %s2406, 8
      %s2408 = scalar_lea.vmem %s7, %s2407
      // Predicated region
      $region49: #{age_gender_forward.1} parent=47 // pred_check
        %p2409 = pneg %p188
      $region50: #{age_gender_forward.1} parent=47 // pred_check_branch
        %2411 = sbr.rel (%p2409) target = $region52
      $region51: #{age_gender_forward.1} parent=47 // pred_region
        _
      $region52: #{age_gender_forward.1} parent=47 // pred_fallthru
        _
    $region48: #{age_gender_forward.1} parent=5 // pred_fallthru
      _
    %p2412 = scmp.le.s32.totalorder 2, %s13
    // Predicated region
    $region53: #{age_gender_forward.1} parent=5 // pred_check
      %p2413 = pneg %p2412
    $region54: #{age_gender_forward.1} parent=5 // pred_check_branch
      %2415 = sbr.rel (%p2413) target = $region56
    $region55: #{age_gender_forward.1} parent=5 // pred_region
      %s2416 = ssub.s32 %s13, 2
      // Predicated region
      $region57: #{age_gender_forward.1} parent=55 // pred_check
        %p2417 = pneg %p194
      $region58: #{age_gender_forward.1} parent=55 // pred_check_branch
        %2419 = sbr.rel (%p2417) target = $region60
      $region59: #{age_gender_forward.1} parent=55 // pred_region
        %p2420 = scmp.lt.s32.totalorder %s19, 1
        %s2421 = scalar_select %p2420, %s19, 1
        %s2422 = smul.addr %s2421, 8
        %s2423 = scalar_lea.vmem %s7, %s2422
      $region60: #{age_gender_forward.1} parent=55 // pred_fallthru
        _
    $region56: #{age_gender_forward.1} parent=5 // pred_fallthru
      _
  $region6: #{age_gender_forward.1} parent=0 // loop_footer
    %s17 = sadd.s32 1, %s13
  $region7: #{age_gender_forward.1} parent=0 // loop_footer_branch
    %12 = sbr.rel target = $region3
  $region8: #{age_gender_forward.1} parent=0 // loop_exit
    _

</llo_original>
